<compile_context>
chip_gen: v6e
topology: v6e:2x2x1
jax: 0.10.0
libtpu: 0.0.40
codegen_flags: <defaults>
</compile_context>

<pallas_src>
import functools

import numpy as np

import jax
import jax.numpy as jnp
from jax.experimental import pallas as pl
from jax.experimental.pallas import tpu as pltpu

LEAKY_SLOPE = 0.01   # torch.nn.LeakyReLU default
BN_EPS = 1e-5        # torch.nn.BatchNorm1d default
LANE = 128
SUBLANE = 8


def _round_up(x, m):
    return ((x + m - 1) // m) * m


# ----------------------------------------------------------------------------
# Init-time lowering of Conv1d / ConvTranspose1d to banded matmul matrices
# ----------------------------------------------------------------------------
def _conv1d_as_matrix(w, lin, lout, stride, pad):
    """w: torch Conv1d weight (Cout, Cin, k) -> (Cin*Lin, Cout*Lout) matrix."""
    cout, cin, k = w.shape
    m = np.zeros((cin * lin, cout * lout), np.float32)
    for co in range(cout):
        for ci in range(cin):
            for lo in range(lout):
                base = lo * stride - pad
                for dk in range(k):
                    li = base + dk
                    if 0 <= li < lin:
                        m[ci * lin + li, co * lout + lo] = w[co, ci, dk]
    return m


def _convtranspose1d_as_matrix(w, lin, lout, stride, pad):
    """w: torch ConvTranspose1d weight (Cin, Cout, k) -> (Cin*Lin, Cout*Lout)."""
    cin, cout, k = w.shape
    m = np.zeros((cin * lin, cout * lout), np.float32)
    for ci in range(cin):
        for co in range(cout):
            for li in range(lin):
                base = li * stride - pad
                for dk in range(k):
                    lo = base + dk
                    if 0 <= lo < lout:
                        m[ci * lin + li, co * lout + lo] = w[ci, co, dk]
    return m


def _embed(mat, rows, cols):
    mat = np.asarray(mat, np.float32)
    r, c = mat.shape
    assert r <= rows and c <= cols, (mat.shape, rows, cols)
    out = np.zeros((rows, cols), np.float32)
    out[:r, :c] = mat
    return out


class _Slab:
    """Row-stacked (R, width) parameter slab; entries start at aligned rows."""

    def __init__(self, width, row_align):
        self.width = width
        self.row_align = row_align
        self.blocks = []
        self.nrows = 0

    def add(self, mat):
        mat = np.asarray(mat, np.float32)
        k, n = mat.shape
        assert n <= self.width
        kp = _round_up(max(k, 1), self.row_align)
        buf = np.zeros((kp, self.width), np.float32)
        buf[:k, :n] = mat
        off = self.nrows
        self.blocks.append(buf)
        self.nrows += kp
        return (off, k, n)

    def finalize(self, dtype):
        return jnp.asarray(np.concatenate(self.blocks, axis=0), dtype)


# ----------------------------------------------------------------------------
# Fused forward kernel
# ----------------------------------------------------------------------------
def _cvae_fused_kernel(data_ref, wslab_ref, pslab_ref, out_ref, *, meta):
    B = meta["batch"]                 # real batch rows
    latent = meta["latent"]
    xw = meta["x_width"]              # 4 * fragment_size
    out4 = meta["out_len4"]           # 4 * out_len
    pad_cols = meta["out_pad"]
    B_pad = out_ref.shape[0]

    def dot32(a, b):
        return jnp.dot(a, b, preferred_element_type=jnp.float32)

    def wmat(ent):                    # bf16 weight-slab window
        off, k, n = ent
        return wslab_ref[off:off + k, 0:n]

    def pmat(ent):                    # f32 param-slab window
        off, k, n = ent
        return pslab_ref[off:off + k, 0:n]

    def prow(row, n):                 # single parameter row
        return pslab_ref[row:row + 1, 0:n]

    if B == B_pad:
        mask_rows = lambda v: v
    else:
        rmask = jax.lax.broadcasted_iota(jnp.int32, (B_pad, 1), 0) < B
        mask_rows = lambda v: jnp.where(rmask, v, 0.0)

    def conv_bn_leaky(h, lyr):
        out_w = lyr["w"][2]
        chan_w = lyr["pt"][1]
        vec = lyr["vec"]
        inv_n = 1.0 / float(B * lyr["lout"])
        # Conv1d / ConvTranspose1d as ONE banded matmul (bf16 ops, f32 accum)
        y = dot32(h.astype(jnp.bfloat16), wmat(lyr["w"])) + prow(vec, out_w)
        y = jnp.maximum(y, LEAKY_SLOPE * y)               # LeakyReLU
        # TODO(synk): torch Dropout(p=0.0) between activation and BN is the
        #             identity, so it is omitted.
        # Training-mode BatchNorm1d: per-channel stats over the *real* batch
        # rows, reduced / broadcast via 0/1 indicator matmuls (no reshapes).
        p = pmat(lyr["p"])                                # (out_w, chan_w) f32 reduce
        pt = wmat(lyr["pt"])                              # (chan_w, out_w) bf16 bcast
        col_sum = jnp.sum(mask_rows(y), axis=0, keepdims=True)            # f32 reduce
        mean_c = dot32(col_sum, p) * inv_n                                # per-channel mean
        mean_b = dot32(mean_c.astype(jnp.bfloat16), pt)                   # bcast over length
        d = y - mean_b
        var_c = dot32(jnp.sum(mask_rows(d * d), axis=0, keepdims=True), p) * inv_n
        scale_c = jax.lax.rsqrt(var_c + BN_EPS) * prow(vec + 1, chan_w)   # fold gamma
        scale_b = dot32(scale_c.astype(jnp.bfloat16), pt)
        return d * scale_b + prow(vec + 2, out_w)                         # + beta

    data = data_ref[...]                                  # (B_pad, data_w) f32: x | eps
    eps = data[:, xw:xw + latent]

    # ---------------- encoder ----------------
    h = data                                              # first conv consumes full width
    for lyr in meta["enc"]:
        h = conv_bn_leaky(h, lyr)

    # -------- bottleneck: fused mu|logvar projection, softplus, reparam -----
    # (the .view flatten is a no-op: activations are already channel-major)
    bvec = meta["bneck_vec"]
    mulv = dot32(h.astype(jnp.bfloat16), wmat(meta["w_mulv"])) + prow(bvec, 2 * latent)
    mu = mulv[:, 0:latent]
    pre = mulv[:, latent:2 * latent]
    logvar = jnp.maximum(pre, 0.0) + jnp.log1p(jnp.exp(-jnp.abs(pre)))    # softplus
    z = eps * jnp.exp(0.5 * logvar) + mu                                  # reparameterize
    h = dot32(z.astype(jnp.bfloat16), wmat(meta["w_lat"])) + prow(bvec + 1,
                                                                  meta["w_lat"][2])

    # ---------------- decoder ----------------
    for lyr in meta["dec"]:
        h = conv_bn_leaky(h, lyr)

    # output ConvTranspose1d (no activation / no batchnorm)
    recon = dot32(h.astype(jnp.bfloat16), wmat(meta["w_out"])) + prow(bvec + 2, out4)

    # one lane-dense packed output slab: [recon | mu | logvar | zero pad]
    pieces = [recon, mu, logvar]
    if pad_cols > 0:
        pieces.append(jnp.zeros((B_pad, pad_cols), jnp.float32))
    out_ref[...] = jnp.concatenate(pieces, axis=1)


# ----------------------------------------------------------------------------
# CVAE module (parameters initialized deterministically in-script)
# ----------------------------------------------------------------------------
class CVAEPallas:
    def __init__(self, latent_size, alpha, dropout, channels, kernels, strides,
                 padding, fragment_size, key):
        assert dropout == 0.0, "dropout treated as identity (p=0)"
        self.latent_size = latent_size
        self.alpha = alpha
        self.channels = list(channels)
        self.fragment_size = fragment_size

        # replicate the torch fc_size computation
        fc = float(fragment_size)
        for i in range(len(channels)):
            fc = (fc - kernels[i] + 2 * padding[i]) / strides[i] + 1
        self.fc_size = int(fc)
        self.F = self.fc_size * channels[-1]

        keys = iter(jax.random.split(key, 4 * len(channels) + 8))

        def init(shape, scale=0.1):
            return np.asarray(scale * jax.random.normal(next(keys), shape, jnp.float32))

        # ---- layer geometry ----
        L = fragment_size
        enc_geo = []
        cin, lin = 4, L
        for cout, k, s, p in zip(channels, kernels, strides, padding):
            lout = (lin - k + 2 * p) // s + 1
            enc_geo.append((cin, cout, k, s, p, lin, lout))
            cin, lin = cout, lout
        assert lin == self.fc_size

        dec_geo = []
        rev_c, rev_k = channels[::-1], kernels[::-1]
        rev_s, rev_p = strides[::-1], padding[::-1]
        lin = self.fc_size
        for i in range(len(channels) - 1):
            cin_d, cout_d = rev_c[i], rev_c[i + 1]
            k, s, p = rev_k[i], rev_s[i], rev_p[i]
            lout = (lin - 1) * s - 2 * p + k
            dec_geo.append((cin_d, cout_d, k, s, p, lin, lout))
            lin = lout
        # output ConvTranspose1d(channels[0] -> 4)
        self.out_len = (lin - 1) * strides[0] - 2 * padding[0] + kernels[0]
        # TODO(synk): ConvTranspose output_padding is not modeled; out_len must
        #             reconstruct fragment_size only for configs where it does.

        # ---- padded widths (all multiples of 128 lanes) ----
        CHAN_W = LANE
        assert max([4] + self.channels) <= CHAN_W
        self.data_w = _round_up(4 * L + latent_size, LANE)     # x | eps slab
        enc_out_w = [_round_up(g[1] * g[6], LANE) for g in enc_geo]
        dec_out_w = [_round_up(g[1] * g[6], LANE) for g in dec_geo]
        dec_in_w = _round_up(self.F, LANE)
        out4 = 4 * self.out_len
        self.out_w_total = _round_up(out4 + 2 * latent_size, LANE)
        W_slab = max([LANE, self.data_w, dec_in_w, _round_up(out4, LANE)]
                     + enc_out_w + dec_out_w)

        wslab = _Slab(W_slab, 16)      # bf16 matrix slab (16-row aligned entries)
        pslab = _Slab(W_slab, SUBLANE)  # f32 vector / indicator slab

        def add_conv_bn(conv_mat, bias, cin_w, cout_w, C, Lout):
            w_ent = wslab.add(_embed(conv_mat, cin_w, cout_w))
            CL = C * Lout
            P = np.kron(np.eye(C, dtype=np.float32), np.ones((Lout, 1), np.float32))
            p_ent = pslab.add(_embed(P, cout_w, CHAN_W))        # (CL, C) reduce, f32
            pt_ent = wslab.add(_embed(P.T, CHAN_W, cout_w))     # (C, CL) bcast, bf16
            vec = np.zeros((3, W_slab), np.float32)
            vec[0, :CL] = np.repeat(bias, Lout)                 # conv bias over length
            vec[1, :C] = 1.0                                    # BN gamma (torch init)
            vec[2, :CL] = 0.0                                   # BN beta  (torch init)
            v_ent = pslab.add(vec)
            return dict(w=w_ent, p=p_ent, pt=pt_ent, vec=v_ent[0], lout=Lout)

        enc_meta, dec_meta = [], []

        # ---- encoder convs ----
        cur_w = self.data_w
        for (cin_g, cout_g, k, s, p, lin_g, lout_g), ow in zip(enc_geo, enc_out_w):
            w = init((cout_g, cin_g, k))                        # torch Conv1d layout
            cm = _conv1d_as_matrix(w, lin_g, lout_g, s, p)
            enc_meta.append(add_conv_bn(cm, init((cout_g,)), cur_w, ow, cout_g, lout_g))
            cur_w = ow

        # ---- bottleneck: fused mu|logvar projection + latent linear ----
        wmu, bmu = init((self.F, latent_size)), init((latent_size,))
        wlv, blv = init((self.F, latent_size)), init((latent_size,))
        wlat, blat = init((latent_size, self.F)), init((self.F,))
        w_mulv_ent = wslab.add(_embed(np.concatenate([wmu, wlv], axis=1),
                                      cur_w, 2 * latent_size))
        w_lat_ent = wslab.add(_embed(wlat, latent_size, dec_in_w))

        # ---- decoder conv-transposes ----
        cur_w = dec_in_w
        for (cin_g, cout_g, k, s, p, lin_g, lout_g), ow in zip(dec_geo, dec_out_w):
            w_t = init((cin_g, cout_g, k))                      # torch ConvTranspose1d layout
            cm = _convtranspose1d_as_matrix(w_t, lin_g, lout_g, s, p)
            dec_meta.append(add_conv_bn(cm, init((cout_g,)), cur_w, ow, cout_g, lout_g))
            cur_w = ow

        # ---- output ConvTranspose1d(channels[0] -> 4) ----
        lin_out = dec_geo[-1][6] if dec_geo else self.fc_size
        w_t = init((channels[0], 4, kernels[0]))
        cm = _convtranspose1d_as_matrix(w_t, lin_out, self.out_len,
                                        strides[0], padding[0])
        w_out_ent = wslab.add(_embed(cm, cur_w, out4))
        b_out = init((4,))

        bvec = np.zeros((3, W_slab), np.float32)
        bvec[0, :2 * latent_size] = np.concatenate([bmu, blv])
        bvec[1, :self.F] = blat
        bvec[2, :out4] = np.repeat(b_out, self.out_len)
        bneck_vec_ent = pslab.add(bvec)

        self.w_slab = wslab.finalize(jnp.bfloat16)
        self.p_slab = pslab.finalize(jnp.float32)

        self.static_meta = dict(
            enc=enc_meta, dec=dec_meta,
            w_mulv=w_mulv_ent, w_lat=w_lat_ent, w_out=w_out_ent,
            bneck_vec=bneck_vec_ent[0],
            latent=latent_size, x_width=4 * L,
            out_len4=out4,
            out_pad=self.out_w_total - out4 - 2 * latent_size,
        )

        # rough cost-estimate bookkeeping
        batch_mm = [l["w"] for l in enc_meta + dec_meta] + [w_mulv_ent, w_lat_ent, w_out_ent]
        self._flops_per_row = 2 * sum(k * n for (_, k, n) in batch_mm)
        self._bn_flops = 8 * sum(k * n for (_, k, n) in
                                 [l["p"] for l in enc_meta + dec_meta])
        self._transc_per_row = 3 * latent_size
        self._transc_fixed = (len(enc_meta) + len(dec_meta)) * CHAN_W

    def forward(self, x, eps_noise):
        B = x.shape[0]
        L = self.fragment_size
        B_pad = _round_up(max(B, SUBLANE), SUBLANE)

        # pack x (channel-major flat, == torch .view order) and eps into one slab
        x_flat = x.reshape(B, 4 * L).astype(jnp.float32)
        data = jnp.zeros((B_pad, self.data_w), jnp.float32)
        data = data.at[:B, :4 * L].set(x_flat)
        data = data.at[:B, 4 * L:4 * L + self.latent_size].set(
            eps_noise.astype(jnp.float32))

        meta = dict(self.static_meta, batch=B)

        cost = pl.CostEstimate(
            flops=int(B_pad * self._flops_per_row + self._bn_flops),
            transcendentals=int(B_pad * self._transc_per_row + self._transc_fixed),
            bytes_accessed=int(data.size * 4 + self.w_slab.size * 2
                               + self.p_slab.size * 4
                               + B_pad * self.out_w_total * 4),
        )

        packed = pl.pallas_call(
            functools.partial(_cvae_fused_kernel, meta=meta),
            out_shape=jax.ShapeDtypeStruct((B_pad, self.out_w_total), jnp.float32),
            in_specs=[pl.BlockSpec(memory_space=pltpu.MemorySpace.VMEM)] * 3,
            out_specs=pl.BlockSpec(memory_space=pltpu.MemorySpace.VMEM),
            compiler_params=pltpu.CompilerParams(vmem_limit_bytes=32 * 1024 * 1024),
            cost_estimate=cost,
        )(data, self.w_slab, self.p_slab)

        out4 = 4 * self.out_len
        recon = packed[:B, :out4].reshape(B, 4, self.out_len)
        mu = packed[:B, out4:out4 + self.latent_size]
        logvar = packed[:B, out4 + self.latent_size:out4 + 2 * self.latent_size]
        return recon, mu, logvar


# ----------------------------------------------------------------------------
if __name__ == "__main__":
    key = jax.random.PRNGKey(0)
    k_x, k_noise, k_params = jax.random.split(key, 3)

    B, L, LATENT = 2, 16, 8
    x = jax.random.normal(k_x, (B, 4, L), jnp.float32)        # (batch, 4-base, fragment)
    eps_noise = jax.random.normal(k_noise, (B, LATENT), jnp.float32)

    model = CVAEPallas(latent_size=LATENT, alpha=1.0, dropout=0.0,
                       channels=[8, 16], kernels=[4, 4], strides=[2, 2],
                       padding=[1, 1], fragment_size=L, key=k_params)

    recon, mu, logvar = model.forward(x, eps_noise)
    jax.block_until_ready((recon, mu, logvar))

    assert recon.shape == (B, 4, L), recon.shape
    assert mu.shape == (B, LATENT) and logvar.shape == (B, LATENT)
    assert bool(jnp.all(jnp.isfinite(recon))) and bool(jnp.all(logvar >= 0.0))
    print("KERNEL_OK")
</pallas_src>

<mosaic_0001>
module attributes {stable_mosaic.version = 11 : i64} {
  func.func @_cvae_fused_kernel(%arg0: memref<8x128xf32, #tpu.memory_space<vmem>>, %arg1: memref<1040x128xbf16, #tpu.memory_space<vmem>>, %arg2: memref<416x128xf32, #tpu.memory_space<vmem>>, %arg3: memref<8x128xf32, #tpu.memory_space<vmem>>) attributes {dimension_semantics = [], scalar_prefetch = 0 : i64, scratch_operands = 0 : i64, tpu.core_type = #tpu.core_type<tc>} {
    %0 = tpu.iota {dimensions = array<i32: 0>} : vector<8x1xi32>
    %c2_i32 = arith.constant 2 : i32
    %1 = vector.broadcast %c2_i32 : i32 to vector<8x1xi32>
    %2 = arith.cmpi slt, %0, %1 : vector<8x1xi32>
    %c0 = arith.constant 0 : index
    %c0_0 = arith.constant 0 : index
    %3 = vector.load %arg0[%c0, %c0_0] : memref<8x128xf32, #tpu.memory_space<vmem>>, vector<8x128xf32>
    %4 = vector.extract_strided_slice %3 {offsets = [0, 64], sizes = [8, 8], strides = [1, 1]} : vector<8x128xf32> to vector<8x8xf32>
    %5 = arith.truncf %3 : vector<8x128xf32> to vector<8x128xbf16>
    %c0_1 = arith.constant 0 : index
    %c0_2 = arith.constant 0 : index
    %6 = vector.load %arg1[%c0_1, %c0_2] : memref<1040x128xbf16, #tpu.memory_space<vmem>>, vector<128x128xbf16>
    %cst = arith.constant dense<0.000000e+00> : vector<8x128xf32>
    %7 = tpu.matmul %5, %6, %cst {dimension_numbers = #tpu.dot_dimension_numbers<[1], [0], [0], [1], [0, 0, 1, 1], [], []>} : vector<8x128xbf16>, vector<128x128xbf16>, vector<8x128xf32> -> vector<8x128xf32>
    %c128 = arith.constant 128 : index
    %c0_3 = arith.constant 0 : index
    %8 = vector.load %arg2[%c128, %c0_3] : memref<416x128xf32, #tpu.memory_space<vmem>>, vector<1x128xf32>
    %9 = vector.broadcast %8 : vector<1x128xf32> to vector<8x128xf32>
    %10 = arith.addf %7, %9 : vector<8x128xf32>
    %cst_4 = arith.constant 0.00999999977 : f32
    %11 = vector.broadcast %cst_4 : f32 to vector<8x128xf32>
    %12 = arith.mulf %11, %10 : vector<8x128xf32>
    %13 = arith.maximumf %10, %12 : vector<8x128xf32>
    %c0_5 = arith.constant 0 : index
    %c0_6 = arith.constant 0 : index
    %14 = vector.load %arg2[%c0_5, %c0_6] : memref<416x128xf32, #tpu.memory_space<vmem>>, vector<128x128xf32>
    %c128_7 = arith.constant 128 : index
    %c0_8 = arith.constant 0 : index
    %15 = vector.load %arg1[%c128_7, %c0_8] : memref<1040x128xbf16, #tpu.memory_space<vmem>>, vector<128x128xbf16>
    %cst_9 = arith.constant 0.000000e+00 : f32
    %16 = vector.shape_cast %2 : vector<8x1xi1> to vector<8x1xi1>
    %17 = vector.broadcast %16 : vector<8x1xi1> to vector<8x128xi1>
    %18 = vector.broadcast %cst_9 : f32 to vector<8x128xf32>
    %19 = arith.select %17, %13, %18 : vector<8x128xi1>, vector<8x128xf32>
    %cst_10 = arith.constant dense<0.000000e+00> : vector<128xf32>
    %20 = vector.multi_reduction <add>, %19, %cst_10 [0] : vector<8x128xf32> to vector<128xf32>
    %21 = vector.shape_cast %20 : vector<128xf32> to vector<1x128xf32>
    %cst_11 = arith.constant dense<0.000000e+00> : vector<1x128xf32>
    %22 = tpu.matmul %21, %14, %cst_11 {dimension_numbers = #tpu.dot_dimension_numbers<[1], [0], [0], [1], [0, 0, 1, 1], [], []>} : vector<1x128xf32>, vector<128x128xf32>, vector<1x128xf32> -> vector<1x128xf32>
    %cst_12 = arith.constant 6.250000e-02 : f32
    %23 = vector.broadcast %cst_12 : f32 to vector<1x128xf32>
    %24 = arith.mulf %22, %23 : vector<1x128xf32>
    %25 = arith.truncf %24 : vector<1x128xf32> to vector<1x128xbf16>
    %cst_13 = arith.constant dense<0.000000e+00> : vector<1x128xf32>
    %26 = tpu.matmul %25, %15, %cst_13 {dimension_numbers = #tpu.dot_dimension_numbers<[1], [0], [0], [1], [0, 0, 1, 1], [], []>} : vector<1x128xbf16>, vector<128x128xbf16>, vector<1x128xf32> -> vector<1x128xf32>
    %27 = vector.broadcast %26 : vector<1x128xf32> to vector<8x128xf32>
    %28 = arith.subf %13, %27 : vector<8x128xf32>
    %29 = arith.mulf %28, %28 : vector<8x128xf32>
    %cst_14 = arith.constant 0.000000e+00 : f32
    %30 = vector.shape_cast %2 : vector<8x1xi1> to vector<8x1xi1>
    %31 = vector.broadcast %30 : vector<8x1xi1> to vector<8x128xi1>
    %32 = vector.broadcast %cst_14 : f32 to vector<8x128xf32>
    %33 = arith.select %31, %29, %32 : vector<8x128xi1>, vector<8x128xf32>
    %cst_15 = arith.constant dense<0.000000e+00> : vector<128xf32>
    %34 = vector.multi_reduction <add>, %33, %cst_15 [0] : vector<8x128xf32> to vector<128xf32>
    %35 = vector.shape_cast %34 : vector<128xf32> to vector<1x128xf32>
    %cst_16 = arith.constant dense<0.000000e+00> : vector<1x128xf32>
    %36 = tpu.matmul %35, %14, %cst_16 {dimension_numbers = #tpu.dot_dimension_numbers<[1], [0], [0], [1], [0, 0, 1, 1], [], []>} : vector<1x128xf32>, vector<128x128xf32>, vector<1x128xf32> -> vector<1x128xf32>
    %cst_17 = arith.constant 6.250000e-02 : f32
    %37 = vector.broadcast %cst_17 : f32 to vector<1x128xf32>
    %38 = arith.mulf %36, %37 : vector<1x128xf32>
    %cst_18 = arith.constant 9.99999974E-6 : f32
    %39 = vector.broadcast %cst_18 : f32 to vector<1x128xf32>
    %40 = arith.addf %38, %39 : vector<1x128xf32>
    %41 = math.rsqrt %40 : vector<1x128xf32>
    %c129 = arith.constant 129 : index
    %c0_19 = arith.constant 0 : index
    %42 = vector.load %arg2[%c129, %c0_19] : memref<416x128xf32, #tpu.memory_space<vmem>>, vector<1x128xf32>
    %43 = arith.mulf %41, %42 : vector<1x128xf32>
    %44 = arith.truncf %43 : vector<1x128xf32> to vector<1x128xbf16>
    %cst_20 = arith.constant dense<0.000000e+00> : vector<1x128xf32>
    %45 = tpu.matmul %44, %15, %cst_20 {dimension_numbers = #tpu.dot_dimension_numbers<[1], [0], [0], [1], [0, 0, 1, 1], [], []>} : vector<1x128xbf16>, vector<128x128xbf16>, vector<1x128xf32> -> vector<1x128xf32>
    %46 = vector.broadcast %45 : vector<1x128xf32> to vector<8x128xf32>
    %47 = arith.mulf %28, %46 : vector<8x128xf32>
    %c130 = arith.constant 130 : index
    %c0_21 = arith.constant 0 : index
    %48 = vector.load %arg2[%c130, %c0_21] : memref<416x128xf32, #tpu.memory_space<vmem>>, vector<1x128xf32>
    %49 = vector.broadcast %48 : vector<1x128xf32> to vector<8x128xf32>
    %50 = arith.addf %47, %49 : vector<8x128xf32>
    %51 = arith.truncf %50 : vector<8x128xf32> to vector<8x128xbf16>
    %c256 = arith.constant 256 : index
    %c0_22 = arith.constant 0 : index
    %52 = vector.load %arg1[%c256, %c0_22] : memref<1040x128xbf16, #tpu.memory_space<vmem>>, vector<128x128xbf16>
    %cst_23 = arith.constant dense<0.000000e+00> : vector<8x128xf32>
    %53 = tpu.matmul %51, %52, %cst_23 {dimension_numbers = #tpu.dot_dimension_numbers<[1], [0], [0], [1], [0, 0, 1, 1], [], []>} : vector<8x128xbf16>, vector<128x128xbf16>, vector<8x128xf32> -> vector<8x128xf32>
    %c264 = arith.constant 264 : index
    %c0_24 = arith.constant 0 : index
    %54 = vector.load %arg2[%c264, %c0_24] : memref<416x128xf32, #tpu.memory_space<vmem>>, vector<1x128xf32>
    %55 = vector.broadcast %54 : vector<1x128xf32> to vector<8x128xf32>
    %56 = arith.addf %53, %55 : vector<8x128xf32>
    %cst_25 = arith.constant 0.00999999977 : f32
    %57 = vector.broadcast %cst_25 : f32 to vector<8x128xf32>
    %58 = arith.mulf %57, %56 : vector<8x128xf32>
    %59 = arith.maximumf %56, %58 : vector<8x128xf32>
    %c136 = arith.constant 136 : index
    %c0_26 = arith.constant 0 : index
    %60 = vector.load %arg2[%c136, %c0_26] : memref<416x128xf32, #tpu.memory_space<vmem>>, vector<128x128xf32>
    %c384 = arith.constant 384 : index
    %c0_27 = arith.constant 0 : index
    %61 = vector.load %arg1[%c384, %c0_27] : memref<1040x128xbf16, #tpu.memory_space<vmem>>, vector<128x128xbf16>
    %cst_28 = arith.constant 0.000000e+00 : f32
    %62 = vector.shape_cast %2 : vector<8x1xi1> to vector<8x1xi1>
    %63 = vector.broadcast %62 : vector<8x1xi1> to vector<8x128xi1>
    %64 = vector.broadcast %cst_28 : f32 to vector<8x128xf32>
    %65 = arith.select %63, %59, %64 : vector<8x128xi1>, vector<8x128xf32>
    %cst_29 = arith.constant dense<0.000000e+00> : vector<128xf32>
    %66 = vector.multi_reduction <add>, %65, %cst_29 [0] : vector<8x128xf32> to vector<128xf32>
    %67 = vector.shape_cast %66 : vector<128xf32> to vector<1x128xf32>
    %cst_30 = arith.constant dense<0.000000e+00> : vector<1x128xf32>
    %68 = tpu.matmul %67, %60, %cst_30 {dimension_numbers = #tpu.dot_dimension_numbers<[1], [0], [0], [1], [0, 0, 1, 1], [], []>} : vector<1x128xf32>, vector<128x128xf32>, vector<1x128xf32> -> vector<1x128xf32>
    %cst_31 = arith.constant 1.250000e-01 : f32
    %69 = vector.broadcast %cst_31 : f32 to vector<1x128xf32>
    %70 = arith.mulf %68, %69 : vector<1x128xf32>
    %71 = arith.truncf %70 : vector<1x128xf32> to vector<1x128xbf16>
    %cst_32 = arith.constant dense<0.000000e+00> : vector<1x128xf32>
    %72 = tpu.matmul %71, %61, %cst_32 {dimension_numbers = #tpu.dot_dimension_numbers<[1], [0], [0], [1], [0, 0, 1, 1], [], []>} : vector<1x128xbf16>, vector<128x128xbf16>, vector<1x128xf32> -> vector<1x128xf32>
    %73 = vector.broadcast %72 : vector<1x128xf32> to vector<8x128xf32>
    %74 = arith.subf %59, %73 : vector<8x128xf32>
    %75 = arith.mulf %74, %74 : vector<8x128xf32>
    %cst_33 = arith.constant 0.000000e+00 : f32
    %76 = vector.shape_cast %2 : vector<8x1xi1> to vector<8x1xi1>
    %77 = vector.broadcast %76 : vector<8x1xi1> to vector<8x128xi1>
    %78 = vector.broadcast %cst_33 : f32 to vector<8x128xf32>
    %79 = arith.select %77, %75, %78 : vector<8x128xi1>, vector<8x128xf32>
    %cst_34 = arith.constant dense<0.000000e+00> : vector<128xf32>
    %80 = vector.multi_reduction <add>, %79, %cst_34 [0] : vector<8x128xf32> to vector<128xf32>
    %81 = vector.shape_cast %80 : vector<128xf32> to vector<1x128xf32>
    %cst_35 = arith.constant dense<0.000000e+00> : vector<1x128xf32>
    %82 = tpu.matmul %81, %60, %cst_35 {dimension_numbers = #tpu.dot_dimension_numbers<[1], [0], [0], [1], [0, 0, 1, 1], [], []>} : vector<1x128xf32>, vector<128x128xf32>, vector<1x128xf32> -> vector<1x128xf32>
    %cst_36 = arith.constant 1.250000e-01 : f32
    %83 = vector.broadcast %cst_36 : f32 to vector<1x128xf32>
    %84 = arith.mulf %82, %83 : vector<1x128xf32>
    %cst_37 = arith.constant 9.99999974E-6 : f32
    %85 = vector.broadcast %cst_37 : f32 to vector<1x128xf32>
    %86 = arith.addf %84, %85 : vector<1x128xf32>
    %87 = math.rsqrt %86 : vector<1x128xf32>
    %c265 = arith.constant 265 : index
    %c0_38 = arith.constant 0 : index
    %88 = vector.load %arg2[%c265, %c0_38] : memref<416x128xf32, #tpu.memory_space<vmem>>, vector<1x128xf32>
    %89 = arith.mulf %87, %88 : vector<1x128xf32>
    %90 = arith.truncf %89 : vector<1x128xf32> to vector<1x128xbf16>
    %cst_39 = arith.constant dense<0.000000e+00> : vector<1x128xf32>
    %91 = tpu.matmul %90, %61, %cst_39 {dimension_numbers = #tpu.dot_dimension_numbers<[1], [0], [0], [1], [0, 0, 1, 1], [], []>} : vector<1x128xbf16>, vector<128x128xbf16>, vector<1x128xf32> -> vector<1x128xf32>
    %92 = vector.broadcast %91 : vector<1x128xf32> to vector<8x128xf32>
    %93 = arith.mulf %74, %92 : vector<8x128xf32>
    %c266 = arith.constant 266 : index
    %c0_40 = arith.constant 0 : index
    %94 = vector.load %arg2[%c266, %c0_40] : memref<416x128xf32, #tpu.memory_space<vmem>>, vector<1x128xf32>
    %95 = vector.broadcast %94 : vector<1x128xf32> to vector<8x128xf32>
    %96 = arith.addf %93, %95 : vector<8x128xf32>
    %97 = arith.truncf %96 : vector<8x128xf32> to vector<8x128xbf16>
    %c512 = arith.constant 512 : index
    %c0_41 = arith.constant 0 : index
    %98 = vector.load %arg1[%c512, %c0_41] : memref<1040x128xbf16, #tpu.memory_space<vmem>>, vector<128x16xbf16>
    %cst_42 = arith.constant dense<0.000000e+00> : vector<8x16xf32>
    %99 = tpu.matmul %97, %98, %cst_42 {dimension_numbers = #tpu.dot_dimension_numbers<[1], [0], [0], [1], [0, 0, 1, 1], [], []>} : vector<8x128xbf16>, vector<128x16xbf16>, vector<8x16xf32> -> vector<8x16xf32>
    %c408 = arith.constant 408 : index
    %c0_43 = arith.constant 0 : index
    %100 = vector.load %arg2[%c408, %c0_43] : memref<416x128xf32, #tpu.memory_space<vmem>>, vector<1x16xf32>
    %101 = vector.broadcast %100 : vector<1x16xf32> to vector<8x16xf32>
    %102 = arith.addf %99, %101 : vector<8x16xf32>
    %103 = vector.extract_strided_slice %102 {offsets = [0, 0], sizes = [8, 8], strides = [1, 1]} : vector<8x16xf32> to vector<8x8xf32>
    %104 = vector.extract_strided_slice %102 {offsets = [0, 8], sizes = [8, 8], strides = [1, 1]} : vector<8x16xf32> to vector<8x8xf32>
    %cst_44 = arith.constant 0.000000e+00 : f32
    %105 = vector.broadcast %cst_44 : f32 to vector<8x8xf32>
    %106 = arith.maximumf %104, %105 : vector<8x8xf32>
    %107 = math.absf %104 : vector<8x8xf32>
    %cst_45 = arith.constant 0.000000e+00 : f32
    %108 = vector.broadcast %cst_45 : f32 to vector<8x8xf32>
    %109 = arith.subf %108, %107 : vector<8x8xf32>
    %110 = math.exp %109 : vector<8x8xf32>
    %111 = math.log1p %110 : vector<8x8xf32>
    %112 = arith.addf %106, %111 : vector<8x8xf32>
    %cst_46 = arith.constant 5.000000e-01 : f32
    %113 = vector.broadcast %cst_46 : f32 to vector<8x8xf32>
    %114 = arith.mulf %113, %112 : vector<8x8xf32>
    %115 = math.exp %114 : vector<8x8xf32>
    %116 = arith.mulf %4, %115 : vector<8x8xf32>
    %117 = arith.addf %116, %103 : vector<8x8xf32>
    %118 = arith.truncf %117 : vector<8x8xf32> to vector<8x8xbf16>
    %c640 = arith.constant 640 : index
    %c0_47 = arith.constant 0 : index
    %119 = vector.load %arg1[%c640, %c0_47] : memref<1040x128xbf16, #tpu.memory_space<vmem>>, vector<8x128xbf16>
    %cst_48 = arith.constant dense<0.000000e+00> : vector<8x128xf32>
    %120 = tpu.matmul %118, %119, %cst_48 {dimension_numbers = #tpu.dot_dimension_numbers<[1], [0], [0], [1], [0, 0, 1, 1], [], []>} : vector<8x8xbf16>, vector<8x128xbf16>, vector<8x128xf32> -> vector<8x128xf32>
    %c409 = arith.constant 409 : index
    %c0_49 = arith.constant 0 : index
    %121 = vector.load %arg2[%c409, %c0_49] : memref<416x128xf32, #tpu.memory_space<vmem>>, vector<1x128xf32>
    %122 = vector.broadcast %121 : vector<1x128xf32> to vector<8x128xf32>
    %123 = arith.addf %120, %122 : vector<8x128xf32>
    %124 = arith.truncf %123 : vector<8x128xf32> to vector<8x128xbf16>
    %c656 = arith.constant 656 : index
    %c0_50 = arith.constant 0 : index
    %125 = vector.load %arg1[%c656, %c0_50] : memref<1040x128xbf16, #tpu.memory_space<vmem>>, vector<128x128xbf16>
    %cst_51 = arith.constant dense<0.000000e+00> : vector<8x128xf32>
    %126 = tpu.matmul %124, %125, %cst_51 {dimension_numbers = #tpu.dot_dimension_numbers<[1], [0], [0], [1], [0, 0, 1, 1], [], []>} : vector<8x128xbf16>, vector<128x128xbf16>, vector<8x128xf32> -> vector<8x128xf32>
    %c400 = arith.constant 400 : index
    %c0_52 = arith.constant 0 : index
    %127 = vector.load %arg2[%c400, %c0_52] : memref<416x128xf32, #tpu.memory_space<vmem>>, vector<1x128xf32>
    %128 = vector.broadcast %127 : vector<1x128xf32> to vector<8x128xf32>
    %129 = arith.addf %126, %128 : vector<8x128xf32>
    %cst_53 = arith.constant 0.00999999977 : f32
    %130 = vector.broadcast %cst_53 : f32 to vector<8x128xf32>
    %131 = arith.mulf %130, %129 : vector<8x128xf32>
    %132 = arith.maximumf %129, %131 : vector<8x128xf32>
    %c272 = arith.constant 272 : index
    %c0_54 = arith.constant 0 : index
    %133 = vector.load %arg2[%c272, %c0_54] : memref<416x128xf32, #tpu.memory_space<vmem>>, vector<128x128xf32>
    %c784 = arith.constant 784 : index
    %c0_55 = arith.constant 0 : index
    %134 = vector.load %arg1[%c784, %c0_55] : memref<1040x128xbf16, #tpu.memory_space<vmem>>, vector<128x128xbf16>
    %cst_56 = arith.constant 0.000000e+00 : f32
    %135 = vector.shape_cast %2 : vector<8x1xi1> to vector<8x1xi1>
    %136 = vector.broadcast %135 : vector<8x1xi1> to vector<8x128xi1>
    %137 = vector.broadcast %cst_56 : f32 to vector<8x128xf32>
    %138 = arith.select %136, %132, %137 : vector<8x128xi1>, vector<8x128xf32>
    %cst_57 = arith.constant dense<0.000000e+00> : vector<128xf32>
    %139 = vector.multi_reduction <add>, %138, %cst_57 [0] : vector<8x128xf32> to vector<128xf32>
    %140 = vector.shape_cast %139 : vector<128xf32> to vector<1x128xf32>
    %cst_58 = arith.constant dense<0.000000e+00> : vector<1x128xf32>
    %141 = tpu.matmul %140, %133, %cst_58 {dimension_numbers = #tpu.dot_dimension_numbers<[1], [0], [0], [1], [0, 0, 1, 1], [], []>} : vector<1x128xf32>, vector<128x128xf32>, vector<1x128xf32> -> vector<1x128xf32>
    %cst_59 = arith.constant 6.250000e-02 : f32
    %142 = vector.broadcast %cst_59 : f32 to vector<1x128xf32>
    %143 = arith.mulf %141, %142 : vector<1x128xf32>
    %144 = arith.truncf %143 : vector<1x128xf32> to vector<1x128xbf16>
    %cst_60 = arith.constant dense<0.000000e+00> : vector<1x128xf32>
    %145 = tpu.matmul %144, %134, %cst_60 {dimension_numbers = #tpu.dot_dimension_numbers<[1], [0], [0], [1], [0, 0, 1, 1], [], []>} : vector<1x128xbf16>, vector<128x128xbf16>, vector<1x128xf32> -> vector<1x128xf32>
    %146 = vector.broadcast %145 : vector<1x128xf32> to vector<8x128xf32>
    %147 = arith.subf %132, %146 : vector<8x128xf32>
    %148 = arith.mulf %147, %147 : vector<8x128xf32>
    %cst_61 = arith.constant 0.000000e+00 : f32
    %149 = vector.shape_cast %2 : vector<8x1xi1> to vector<8x1xi1>
    %150 = vector.broadcast %149 : vector<8x1xi1> to vector<8x128xi1>
    %151 = vector.broadcast %cst_61 : f32 to vector<8x128xf32>
    %152 = arith.select %150, %148, %151 : vector<8x128xi1>, vector<8x128xf32>
    %cst_62 = arith.constant dense<0.000000e+00> : vector<128xf32>
    %153 = vector.multi_reduction <add>, %152, %cst_62 [0] : vector<8x128xf32> to vector<128xf32>
    %154 = vector.shape_cast %153 : vector<128xf32> to vector<1x128xf32>
    %cst_63 = arith.constant dense<0.000000e+00> : vector<1x128xf32>
    %155 = tpu.matmul %154, %133, %cst_63 {dimension_numbers = #tpu.dot_dimension_numbers<[1], [0], [0], [1], [0, 0, 1, 1], [], []>} : vector<1x128xf32>, vector<128x128xf32>, vector<1x128xf32> -> vector<1x128xf32>
    %cst_64 = arith.constant 6.250000e-02 : f32
    %156 = vector.broadcast %cst_64 : f32 to vector<1x128xf32>
    %157 = arith.mulf %155, %156 : vector<1x128xf32>
    %cst_65 = arith.constant 9.99999974E-6 : f32
    %158 = vector.broadcast %cst_65 : f32 to vector<1x128xf32>
    %159 = arith.addf %157, %158 : vector<1x128xf32>
    %160 = math.rsqrt %159 : vector<1x128xf32>
    %c401 = arith.constant 401 : index
    %c0_66 = arith.constant 0 : index
    %161 = vector.load %arg2[%c401, %c0_66] : memref<416x128xf32, #tpu.memory_space<vmem>>, vector<1x128xf32>
    %162 = arith.mulf %160, %161 : vector<1x128xf32>
    %163 = arith.truncf %162 : vector<1x128xf32> to vector<1x128xbf16>
    %cst_67 = arith.constant dense<0.000000e+00> : vector<1x128xf32>
    %164 = tpu.matmul %163, %134, %cst_67 {dimension_numbers = #tpu.dot_dimension_numbers<[1], [0], [0], [1], [0, 0, 1, 1], [], []>} : vector<1x128xbf16>, vector<128x128xbf16>, vector<1x128xf32> -> vector<1x128xf32>
    %165 = vector.broadcast %164 : vector<1x128xf32> to vector<8x128xf32>
    %166 = arith.mulf %147, %165 : vector<8x128xf32>
    %c402 = arith.constant 402 : index
    %c0_68 = arith.constant 0 : index
    %167 = vector.load %arg2[%c402, %c0_68] : memref<416x128xf32, #tpu.memory_space<vmem>>, vector<1x128xf32>
    %168 = vector.broadcast %167 : vector<1x128xf32> to vector<8x128xf32>
    %169 = arith.addf %166, %168 : vector<8x128xf32>
    %170 = arith.truncf %169 : vector<8x128xf32> to vector<8x128xbf16>
    %c912 = arith.constant 912 : index
    %c0_69 = arith.constant 0 : index
    %171 = vector.load %arg1[%c912, %c0_69] : memref<1040x128xbf16, #tpu.memory_space<vmem>>, vector<128x64xbf16>
    %cst_70 = arith.constant dense<0.000000e+00> : vector<8x64xf32>
    %172 = tpu.matmul %170, %171, %cst_70 {dimension_numbers = #tpu.dot_dimension_numbers<[1], [0], [0], [1], [0, 0, 1, 1], [], []>} : vector<8x128xbf16>, vector<128x64xbf16>, vector<8x64xf32> -> vector<8x64xf32>
    %c410 = arith.constant 410 : index
    %c0_71 = arith.constant 0 : index
    %173 = vector.load %arg2[%c410, %c0_71] : memref<416x128xf32, #tpu.memory_space<vmem>>, vector<1x64xf32>
    %174 = vector.broadcast %173 : vector<1x64xf32> to vector<8x64xf32>
    %175 = arith.addf %172, %174 : vector<8x64xf32>
    %cst_72 = arith.constant 0.000000e+00 : f32
    %176 = vector.broadcast %cst_72 : f32 to vector<8x48xf32>
    %177 = tpu.concatenate %175, %103, %112, %176 in 1 : vector<8x64xf32>, vector<8x8xf32>, vector<8x8xf32>, vector<8x48xf32> -> vector<8x128xf32>
    %c0_73 = arith.constant 0 : index
    %c0_74 = arith.constant 0 : index
    %178 = vector.load %arg3[%c0_73, %c0_74] : memref<8x128xf32, #tpu.memory_space<vmem>>, vector<8x128xf32>
    tpu.vector_store %arg3[%c0_73, %c0_74], %177 {strides = array<i32>} : memref<8x128xf32, #tpu.memory_space<vmem>>, vector<8x128xf32>,
    return
  }
}

</mosaic_0001>

<llo_original>
// kernel: tpu_custom_call.1
$region0: #{tpu_custom_call.1}
  #allocation0 [shape = 'u32[]', space=smem, size = 0x4, offset = 0x4, fixed_abs, tag = 'smem constant byte address 0x4 - core index']
  #allocation1 [shape = 'u32[144,128]{1,0:T(1,128)}', space=vmem, size = 0x12000, scoped, tag = 'internal scratch']
  %s0 = inlined_call_operand.hbm [shape: f32[8,128], index: 0, kind: input, shape index: {}]
  %s1 = inlined_call_operand.hbm [shape: bf16[1040,128], index: 1, kind: input, shape index: {}]
  %s2 = inlined_call_operand.hbm [shape: f32[416,128], index: 2, kind: input, shape index: {}]
  %s3 = inlined_call_operand.hbm [shape: f32[8,128], index: 3, kind: output, shape index: {}]
  %s4 = sld [smem:[#allocation0]]
  $region34: #{tpu_custom_call.1} parent=0
    _
  %s6 = ssub.s32 1, %s4
  %s7 = scalar_select 0, %s6, %s4
  $region1: #{tpu_custom_call.1} parent=0
    #allocation2 [shape = 'u8[4096]{0}', space=vmem, size = 0x1000, scoped, tag = 'input window, operand 0, single buffered']
    #allocation3 [shape = 's32[1]{0}', space=sflag, size = 0x4, scoped, tag = 'scoped memory for tpu_custom_call.1']
    #allocation4 [shape = 's32[1]{0}', space=sflag, size = 0x4, scoped, tag = 'scoped memory for tpu_custom_call.1']
    #allocation5 [shape = 'u8[266240]{0}', space=vmem, size = 0x41000, scoped, tag = 'input window, operand 1, single buffered']
    #allocation6 [shape = 's32[1]{0}', space=sflag, size = 0x4, scoped, tag = 'scoped memory for tpu_custom_call.1']
    #allocation7 [shape = 'u8[212992]{0}', space=vmem, size = 0x34000, scoped, tag = 'input window, operand 2, single buffered']
    #allocation8 [shape = 'u8[4096]{0}', space=vmem, size = 0x1000, scoped, tag = 'output window, operand 0, single buffered']
    %8 = vsyncpa [#allocation3], 0
    %9 = vsyncpa [#allocation6], 0
    %10 = vsyncpa [#allocation4], 0
    // Predicated region
    $region2: #{tpu_custom_call.1} parent=1 // pred_check
      _
    $region3: #{tpu_custom_call.1} parent=1 // pred_check_branch
      %12 = sbr.rel (0) target = $region5
    $region4: #{tpu_custom_call.1} parent=1 // pred_region
      %s14 = ssub.s32 128, 128
      %15 = vsyncadd [#allocation3], %s14
      %s17 = sshll.u32 [#allocation2], 4
      %s18 = int_to_ptr.vmem [resolvable:$true] %s17
      %20 = dma.hbm_to_vmem [thread:$0]  %s0, 128, %s18, [#allocation3]
    $region5: #{tpu_custom_call.1} parent=1 // pred_fallthru
      _
    // Predicated region
    $region6: #{tpu_custom_call.1} parent=1 // pred_check
      _
    $region7: #{tpu_custom_call.1} parent=1 // pred_check_branch
      %22 = sbr.rel (0) target = $region9
    $region8: #{tpu_custom_call.1} parent=1 // pred_region
      %s24 = ssub.s32 8320, 8320
      %25 = vsyncadd [#allocation6], %s24
      %s26 = sshll.u32 [#allocation5], 4
      %s27 = int_to_ptr.vmem [resolvable:$true] %s26
      %32 = dma.hbm_to_vmem [thread:$0]  %s1, 8320, %s27, [#allocation6], 64, 64, 4
    $region9: #{tpu_custom_call.1} parent=1 // pred_fallthru
      _
    // Predicated region
    $region10: #{tpu_custom_call.1} parent=1 // pred_check
      _
    $region11: #{tpu_custom_call.1} parent=1 // pred_check_branch
      %34 = sbr.rel (0) target = $region13
    $region12: #{tpu_custom_call.1} parent=1 // pred_region
      %s36 = ssub.s32 6656, 6656
      %37 = vsyncadd [#allocation6], %s36
      %s38 = sshll.u32 [#allocation7], 4
      %s39 = int_to_ptr.vmem [resolvable:$true] %s38
      %44 = dma.hbm_to_vmem [thread:$0]  %s2, 6656, %s39, [#allocation6], 128, 128, 8
    $region13: #{tpu_custom_call.1} parent=1 // pred_fallthru
      _
    // Predicated region
    $region14: #{tpu_custom_call.1} parent=1 // pred_check
      _
    $region15: #{tpu_custom_call.1} parent=1 // pred_check_branch
      %46 = sbr.rel (0) target = $region17
    $region16: #{tpu_custom_call.1} parent=1 // pred_region
      %47 = dma.done [#allocation3], 128
    $region17: #{tpu_custom_call.1} parent=1 // pred_fallthru
      _
    // Predicated region
    $region18: #{tpu_custom_call.1} parent=1 // pred_check
      _
    $region19: #{tpu_custom_call.1} parent=1 // pred_check_branch
      %49 = sbr.rel (0) target = $region21
    $region20: #{tpu_custom_call.1} parent=1 // pred_region
      %50 = dma.done [#allocation6], 8320
    $region21: #{tpu_custom_call.1} parent=1 // pred_fallthru
      _
    // Predicated region
    $region22: #{tpu_custom_call.1} parent=1 // pred_check
      _
    $region23: #{tpu_custom_call.1} parent=1 // pred_check_branch
      %52 = sbr.rel (0) target = $region25
    $region24: #{tpu_custom_call.1} parent=1 // pred_region
      %53 = dma.done [#allocation6], 6656
    $region25: #{tpu_custom_call.1} parent=1 // pred_fallthru
      _
    %v55 = vlaneseq
    %v56 = vshrl.u32 %v55, 7
    %vm57 = vcmp.lt.s32.totalorder %v56, 2
    %v58 = vld [vmem:[#allocation2] sm:$0xff]
    %v59 = vpack.c.bf16 %v58, %v58
    %v60 = vld [vmem:[#allocation5] sm:$0xf]
    %v61 = vld [vmem:[#allocation5 + $0x4] sm:$0xf]
    %v62 = vld [vmem:[#allocation5 + $0x8] sm:$0xf]
    %v63 = vld [vmem:[#allocation5 + $0xc] sm:$0xf]
    %v64 = vld [vmem:[#allocation5 + $0x10] sm:$0xf]
    %v65 = vld [vmem:[#allocation5 + $0x14] sm:$0xf]
    %v66 = vld [vmem:[#allocation5 + $0x18] sm:$0xf]
    %v67 = vld [vmem:[#allocation5 + $0x1c] sm:$0xf]
    %v68 = vld [vmem:[#allocation5 + $0x20] sm:$0xf]
    %v69 = vld [vmem:[#allocation5 + $0x24] sm:$0xf]
    %v70 = vld [vmem:[#allocation5 + $0x28] sm:$0xf]
    %v71 = vld [vmem:[#allocation5 + $0x2c] sm:$0xf]
    %v72 = vld [vmem:[#allocation5 + $0x30] sm:$0xf]
    %v73 = vld [vmem:[#allocation5 + $0x34] sm:$0xf]
    %v74 = vld [vmem:[#allocation5 + $0x38] sm:$0xf]
    %v75 = vld [vmem:[#allocation5 + $0x3c] sm:$0xf]
    %v76 = vld [vmem:[#allocation7 + $0x80] sm:$0x1]
    %v77 = vlaneseq
    %v78 = vshrl.u32 %v77, 7
    %v79 = vsub.s32 0, %v78
    %v80 = vrot.slane %v76, %v79
    %v97 = vunpack.c.l.b16 %v60
    %v98 = vunpack.c.l.b16 %v61
    %v99 = vunpack.c.l.b16 %v62
    %v100 = vunpack.c.l.b16 %v63
    %v101 = vunpack.c.l.b16 %v64
    %v102 = vunpack.c.l.b16 %v65
    %v103 = vunpack.c.l.b16 %v66
    %v104 = vunpack.c.l.b16 %v67
    %v105 = vunpack.c.l.b16 %v68
    %v106 = vunpack.c.l.b16 %v69
    %v107 = vunpack.c.l.b16 %v70
    %v108 = vunpack.c.l.b16 %v71
    %v109 = vunpack.c.l.b16 %v72
    %v110 = vunpack.c.l.b16 %v73
    %v111 = vunpack.c.l.b16 %v74
    %v112 = vunpack.c.l.b16 %v75
    %v113 = vpack.c.b16 %v98, %v97
    %v114 = vpack.c.b16 %v100, %v99
    %v115 = vpack.c.b16 %v102, %v101
    %v116 = vpack.c.b16 %v104, %v103
    %v117 = vpack.c.b16 %v106, %v105
    %v118 = vpack.c.b16 %v108, %v107
    %v119 = vpack.c.b16 %v110, %v109
    %v120 = vpack.c.b16 %v112, %v111
    %129 = vmatprep.subr.bf16.mxu0 0
    %130 = vmatpush1.bf16.msra.mxu0 %v120
    %131 = vmatprep.subr.bf16.mxu0 0
    %132 = vmatpush1.bf16.msra.mxu0 %v119
    %133 = vmatprep.subr.bf16.mxu0 0
    %134 = vmatpush1.bf16.msra.mxu0 %v118
    %135 = vmatprep.subr.bf16.mxu0 0
    %136 = vmatpush1.bf16.msra.mxu0 %v117
    %137 = vmatprep.subr.bf16.mxu0 0
    %138 = vmatpush1.bf16.msra.mxu0 %v116
    %139 = vmatprep.subr.bf16.mxu0 0
    %140 = vmatpush1.bf16.msra.mxu0 %v115
    %141 = vmatprep.subr.bf16.mxu0 0
    %142 = vmatpush1.bf16.msra.mxu0 %v114
    %143 = vmatprep.subr.bf16.mxu0 0
    %144 = vmatpush1.bf16.msra.mxu0 %v113
    %145 = vmatprep.subr.bf16.mxu0 0
    %146 = vmatpush2.bf16.msra.mxu0 0
    %147 = vmatprep.subr.bf16.mxu0 0
    %148 = vmatpush2.bf16.msra.mxu0 0
    %149 = vmatprep.subr.bf16.mxu0 0
    %150 = vmatpush2.bf16.msra.mxu0 0
    %151 = vmatprep.subr.bf16.mxu0 0
    %152 = vmatpush2.bf16.msra.mxu0 0
    %153 = vmatprep.subr.bf16.mxu0 0
    %154 = vmatpush2.bf16.msra.mxu0 0
    %155 = vmatprep.subr.bf16.mxu0 0
    %156 = vmatpush2.bf16.msra.mxu0 0
    %157 = vmatprep.subr.bf16.mxu0 0
    %158 = vmatpush2.bf16.msra.mxu0 0
    %159 = vmatprep.subr.bf16.mxu0 0
    %160 = vmatpush2.bf16.msra.mxu0 0
    %161 = vmatprep.mubr.bf16.mxu0 0
    %162 = vmatmul.mubr.bf16.gmra.mxu0 %v59
    %v163 = vpop.f32.mrf.mxu0
    %v164 = vadd.f32 %v80, %v163
    %v165 = vpop.f32.mrf.mxu0
    %v166 = vpop.f32.mrf.mxu0
    %v167 = vpop.f32.mrf.mxu0
    %168 = vdwg.mxu0
    %v169 = vmul.f32 %v164, 0.01
    %v170 = vmax.f32 %v164, %v169
    %v171 = vld [vmem:[#allocation7] sm:$0xff]
    %v172 = vld [vmem:[#allocation7 + $0x8] sm:$0xff]
    %v173 = vld [vmem:[#allocation7 + $0x10] sm:$0xff]
    %v174 = vld [vmem:[#allocation7 + $0x18] sm:$0xff]
    %v175 = vld [vmem:[#allocation7 + $0x20] sm:$0xff]
    %v176 = vld [vmem:[#allocation7 + $0x28] sm:$0xff]
    %v177 = vld [vmem:[#allocation7 + $0x30] sm:$0xff]
    %v178 = vld [vmem:[#allocation7 + $0x38] sm:$0xff]
    %v179 = vld [vmem:[#allocation7 + $0x40] sm:$0xff]
    %v180 = vld [vmem:[#allocation7 + $0x48] sm:$0xff]
    %v181 = vld [vmem:[#allocation7 + $0x50] sm:$0xff]
    %v182 = vld [vmem:[#allocation7 + $0x58] sm:$0xff]
    %v183 = vld [vmem:[#allocation7 + $0x60] sm:$0xff]
    %v184 = vld [vmem:[#allocation7 + $0x68] sm:$0xff]
    %v185 = vld [vmem:[#allocation7 + $0x70] sm:$0xff]
    %v186 = vld [vmem:[#allocation7 + $0x78] sm:$0xff]
    %v187 = vld [vmem:[#allocation5 + $0x40] sm:$0xf]
    %v188 = vld [vmem:[#allocation5 + $0x44] sm:$0xf]
    %v189 = vld [vmem:[#allocation5 + $0x48] sm:$0xf]
    %v190 = vld [vmem:[#allocation5 + $0x4c] sm:$0xf]
    %v191 = vld [vmem:[#allocation5 + $0x50] sm:$0xf]
    %v192 = vld [vmem:[#allocation5 + $0x54] sm:$0xf]
    %v193 = vld [vmem:[#allocation5 + $0x58] sm:$0xf]
    %v194 = vld [vmem:[#allocation5 + $0x5c] sm:$0xf]
    %v195 = vld [vmem:[#allocation5 + $0x60] sm:$0xf]
    %v196 = vld [vmem:[#allocation5 + $0x64] sm:$0xf]
    %v197 = vld [vmem:[#allocation5 + $0x68] sm:$0xf]
    %v198 = vld [vmem:[#allocation5 + $0x6c] sm:$0xf]
    %v199 = vld [vmem:[#allocation5 + $0x70] sm:$0xf]
    %v200 = vld [vmem:[#allocation5 + $0x74] sm:$0xf]
    %v201 = vld [vmem:[#allocation5 + $0x78] sm:$0xf]
    %v202 = vld [vmem:[#allocation5 + $0x7c] sm:$0xf]
    %v203 = vsel %vm57, 1, 0
    %vm204 = vcmp.eq.s32.totalorder %v203, 1
    %v205 = vsel %vm204, %v170, 0.0
    %v206 = vrot.slane %v205, 4
    %v207 = vadd.f32 %v205, %v206
    %v208 = vrot.slane %v207, 2
    %v209 = vadd.f32 %v207, %v208
    %v210 = vrot.slane %v209, 1
    %v211 = vadd.f32 %v209, %v210
    %212 = vmatprep.subr.mxu0 0.0
    %213 = vmatpush1.msra.mxu0 %v186
    %214 = vmatprep.subr.mxu0 0.0
    %215 = vmatpush1.msra.mxu0 %v185
    %216 = vmatprep.subr.mxu0 0.0
    %217 = vmatpush1.msra.mxu0 %v184
    %218 = vmatprep.subr.mxu0 0.0
    %219 = vmatpush1.msra.mxu0 %v183
    %220 = vmatprep.subr.mxu0 0.0
    %221 = vmatpush1.msra.mxu0 %v182
    %222 = vmatprep.subr.mxu0 0.0
    %223 = vmatpush1.msra.mxu0 %v181
    %224 = vmatprep.subr.mxu0 0.0
    %225 = vmatpush1.msra.mxu0 %v180
    %226 = vmatprep.subr.mxu0 0.0
    %227 = vmatpush1.msra.mxu0 %v179
    %228 = vmatprep.subr.mxu0 0.0
    %229 = vmatpush1.msra.mxu0 %v178
    %230 = vmatprep.subr.mxu0 0.0
    %231 = vmatpush1.msra.mxu0 %v177
    %232 = vmatprep.subr.mxu0 0.0
    %233 = vmatpush1.msra.mxu0 %v176
    %234 = vmatprep.subr.mxu0 0.0
    %235 = vmatpush1.msra.mxu0 %v175
    %236 = vmatprep.subr.mxu0 0.0
    %237 = vmatpush1.msra.mxu0 %v174
    %238 = vmatprep.subr.mxu0 0.0
    %239 = vmatpush1.msra.mxu0 %v173
    %240 = vmatprep.subr.mxu0 0.0
    %241 = vmatpush1.msra.mxu0 %v172
    %242 = vmatprep.subr.mxu0 0.0
    %243 = vmatpush1.msra.mxu0 %v171
    %244 = vmatprep.subr.mxu0 0.0
    %245 = vmatpush2.msra.mxu0 0.0
    %246 = vmatprep.subr.mxu0 0.0
    %247 = vmatpush2.msra.mxu0 0.0
    %248 = vmatprep.subr.mxu0 0.0
    %249 = vmatpush2.msra.mxu0 0.0
    %250 = vmatprep.subr.mxu0 0.0
    %251 = vmatpush2.msra.mxu0 0.0
    %252 = vmatprep.subr.mxu0 0.0
    %253 = vmatpush2.msra.mxu0 0.0
    %254 = vmatprep.subr.mxu0 0.0
    %255 = vmatpush2.msra.mxu0 0.0
    %256 = vmatprep.subr.mxu0 0.0
    %257 = vmatpush2.msra.mxu0 0.0
    %258 = vmatprep.subr.mxu0 0.0
    %259 = vmatpush2.msra.mxu0 0.0
    %260 = vmatprep.subr.mxu0 0.0
    %261 = vmatpush2.msra.mxu0 0.0
    %262 = vmatprep.subr.mxu0 0.0
    %263 = vmatpush2.msra.mxu0 0.0
    %264 = vmatprep.subr.mxu0 0.0
    %265 = vmatpush2.msra.mxu0 0.0
    %266 = vmatprep.subr.mxu0 0.0
    %267 = vmatpush2.msra.mxu0 0.0
    %268 = vmatprep.subr.mxu0 0.0
    %269 = vmatpush2.msra.mxu0 0.0
    %270 = vmatprep.subr.mxu0 0.0
    %271 = vmatpush2.msra.mxu0 0.0
    %272 = vmatprep.subr.mxu0 0.0
    %273 = vmatpush2.msra.mxu0 0.0
    %274 = vmatprep.subr.mxu0 0.0
    %275 = vmatpush2.msra.mxu0 0.0
    %276 = vmatprep.mubr.f32.mxu0 0.0
    %277 = vmatmul.mubr.f32.gmra.mxu0 %v211
    %v278 = vpop.f32.mrf.mxu0
    %v279 = vadd.f32 0.0, %v278
    %v280 = vpop.f32.mrf.mxu0
    %281 = vdwg.mxu0
    %v282 = vmul.f32 %v279, 0.0625
    %v283 = vpack.c.bf16 %v282, %v282
    %v300 = vunpack.c.l.b16 %v187
    %v301 = vunpack.c.l.b16 %v188
    %v302 = vunpack.c.l.b16 %v189
    %v303 = vunpack.c.l.b16 %v190
    %v304 = vunpack.c.l.b16 %v191
    %v305 = vunpack.c.l.b16 %v192
    %v306 = vunpack.c.l.b16 %v193
    %v307 = vunpack.c.l.b16 %v194
    %v308 = vunpack.c.l.b16 %v195
    %v309 = vunpack.c.l.b16 %v196
    %v310 = vunpack.c.l.b16 %v197
    %v311 = vunpack.c.l.b16 %v198
    %v312 = vunpack.c.l.b16 %v199
    %v313 = vunpack.c.l.b16 %v200
    %v314 = vunpack.c.l.b16 %v201
    %v315 = vunpack.c.l.b16 %v202
    %v316 = vpack.c.b16 %v301, %v300
    %v317 = vpack.c.b16 %v303, %v302
    %v318 = vpack.c.b16 %v305, %v304
    %v319 = vpack.c.b16 %v307, %v306
    %v320 = vpack.c.b16 %v309, %v308
    %v321 = vpack.c.b16 %v311, %v310
    %v322 = vpack.c.b16 %v313, %v312
    %v323 = vpack.c.b16 %v315, %v314
    %332 = vmatprep.subr.bf16.mxu0 0
    %333 = vmatpush1.bf16.msra.mxu0 %v323
    %334 = vmatprep.subr.bf16.mxu0 0
    %335 = vmatpush1.bf16.msra.mxu0 %v322
    %336 = vmatprep.subr.bf16.mxu0 0
    %337 = vmatpush1.bf16.msra.mxu0 %v321
    %338 = vmatprep.subr.bf16.mxu0 0
    %339 = vmatpush1.bf16.msra.mxu0 %v320
    %340 = vmatprep.subr.bf16.mxu0 0
    %341 = vmatpush1.bf16.msra.mxu0 %v319
    %342 = vmatprep.subr.bf16.mxu0 0
    %343 = vmatpush1.bf16.msra.mxu0 %v318
    %344 = vmatprep.subr.bf16.mxu0 0
    %345 = vmatpush1.bf16.msra.mxu0 %v317
    %346 = vmatprep.subr.bf16.mxu0 0
    %347 = vmatpush1.bf16.msra.mxu0 %v316
    %348 = vmatprep.subr.bf16.mxu0 0
    %349 = vmatpush2.bf16.msra.mxu0 0
    %350 = vmatprep.subr.bf16.mxu0 0
    %351 = vmatpush2.bf16.msra.mxu0 0
    %352 = vmatprep.subr.bf16.mxu0 0
    %353 = vmatpush2.bf16.msra.mxu0 0
    %354 = vmatprep.subr.bf16.mxu0 0
    %355 = vmatpush2.bf16.msra.mxu0 0
    %356 = vmatprep.subr.bf16.mxu0 0
    %357 = vmatpush2.bf16.msra.mxu0 0
    %358 = vmatprep.subr.bf16.mxu0 0
    %359 = vmatpush2.bf16.msra.mxu0 0
    %360 = vmatprep.subr.bf16.mxu0 0
    %361 = vmatpush2.bf16.msra.mxu0 0
    %362 = vmatprep.subr.bf16.mxu0 0
    %363 = vmatpush2.bf16.msra.mxu0 0
    %364 = vmatprep.mubr.bf16.mxu0 0
    %365 = vmatmul.mubr.bf16.gmra.mxu0 %v283
    %v366 = vpop.f32.mrf.mxu0
    %v367 = vadd.f32 0.0, %v366
    %v368 = vpop.f32.mrf.mxu0
    %v369 = vpop.f32.mrf.mxu0
    %v370 = vpop.f32.mrf.mxu0
    %371 = vdwg.mxu0
    %v372 = vlaneseq
    %v373 = vshrl.u32 %v372, 7
    %v374 = vsub.s32 0, %v373
    %v375 = vrot.slane %v367, %v374
    %v376 = vsub.f32 %v170, %v375
    %v377 = vmul.f32 %v376, %v376
    %v378 = vsel %vm204, %v377, 0.0
    %v379 = vrot.slane %v378, 4
    %v380 = vadd.f32 %v378, %v379
    %v381 = vrot.slane %v380, 2
    %v382 = vadd.f32 %v380, %v381
    %v383 = vrot.slane %v382, 1
    %v384 = vadd.f32 %v382, %v383
    %385 = vmatprep.subr.mxu0 0.0
    %386 = vmatpush1.msra.mxu0 %v186
    %387 = vmatprep.subr.mxu0 0.0
    %388 = vmatpush1.msra.mxu0 %v185
    %389 = vmatprep.subr.mxu0 0.0
    %390 = vmatpush1.msra.mxu0 %v184
    %391 = vmatprep.subr.mxu0 0.0
    %392 = vmatpush1.msra.mxu0 %v183
    %393 = vmatprep.subr.mxu0 0.0
    %394 = vmatpush1.msra.mxu0 %v182
    %395 = vmatprep.subr.mxu0 0.0
    %396 = vmatpush1.msra.mxu0 %v181
    %397 = vmatprep.subr.mxu0 0.0
    %398 = vmatpush1.msra.mxu0 %v180
    %399 = vmatprep.subr.mxu0 0.0
    %400 = vmatpush1.msra.mxu0 %v179
    %401 = vmatprep.subr.mxu0 0.0
    %402 = vmatpush1.msra.mxu0 %v178
    %403 = vmatprep.subr.mxu0 0.0
    %404 = vmatpush1.msra.mxu0 %v177
    %405 = vmatprep.subr.mxu0 0.0
    %406 = vmatpush1.msra.mxu0 %v176
    %407 = vmatprep.subr.mxu0 0.0
    %408 = vmatpush1.msra.mxu0 %v175
    %409 = vmatprep.subr.mxu0 0.0
    %410 = vmatpush1.msra.mxu0 %v174
    %411 = vmatprep.subr.mxu0 0.0
    %412 = vmatpush1.msra.mxu0 %v173
    %413 = vmatprep.subr.mxu0 0.0
    %414 = vmatpush1.msra.mxu0 %v172
    %415 = vmatprep.subr.mxu0 0.0
    %416 = vmatpush1.msra.mxu0 %v171
    %417 = vmatprep.subr.mxu0 0.0
    %418 = vmatpush2.msra.mxu0 0.0
    %419 = vmatprep.subr.mxu0 0.0
    %420 = vmatpush2.msra.mxu0 0.0
    %421 = vmatprep.subr.mxu0 0.0
    %422 = vmatpush2.msra.mxu0 0.0
    %423 = vmatprep.subr.mxu0 0.0
    %424 = vmatpush2.msra.mxu0 0.0
    %425 = vmatprep.subr.mxu0 0.0
    %426 = vmatpush2.msra.mxu0 0.0
    %427 = vmatprep.subr.mxu0 0.0
    %428 = vmatpush2.msra.mxu0 0.0
    %429 = vmatprep.subr.mxu0 0.0
    %430 = vmatpush2.msra.mxu0 0.0
    %431 = vmatprep.subr.mxu0 0.0
    %432 = vmatpush2.msra.mxu0 0.0
    %433 = vmatprep.subr.mxu0 0.0
    %434 = vmatpush2.msra.mxu0 0.0
    %435 = vmatprep.subr.mxu0 0.0
    %436 = vmatpush2.msra.mxu0 0.0
    %437 = vmatprep.subr.mxu0 0.0
    %438 = vmatpush2.msra.mxu0 0.0
    %439 = vmatprep.subr.mxu0 0.0
    %440 = vmatpush2.msra.mxu0 0.0
    %441 = vmatprep.subr.mxu0 0.0
    %442 = vmatpush2.msra.mxu0 0.0
    %443 = vmatprep.subr.mxu0 0.0
    %444 = vmatpush2.msra.mxu0 0.0
    %445 = vmatprep.subr.mxu0 0.0
    %446 = vmatpush2.msra.mxu0 0.0
    %447 = vmatprep.subr.mxu0 0.0
    %448 = vmatpush2.msra.mxu0 0.0
    %449 = vmatprep.mubr.f32.mxu0 0.0
    %450 = vmatmul.mubr.f32.gmra.mxu0 %v384
    %v451 = vpop.f32.mrf.mxu0
    %v452 = vadd.f32 0.0, %v451
    %v453 = vpop.f32.mrf.mxu0
    %454 = vdwg.mxu0
    %v455 = vmul.f32 %v452, 0.0625
    %v456 = vadd.f32 %v455, 1e-05
    %v457 = vrsqrt.pop %v456
    %v458 = vld [vmem:[#allocation7 + $0x81] sm:$0x1]
    %v459 = vmul.f32 %v457, %v458
    %v460 = vpack.c.bf16 %v459, %v459
    %461 = vmatprep.subr.bf16.mxu0 0
    %462 = vmatpush1.bf16.msra.mxu0 %v323
    %463 = vmatprep.subr.bf16.mxu0 0
    %464 = vmatpush1.bf16.msra.mxu0 %v322
    %465 = vmatprep.subr.bf16.mxu0 0
    %466 = vmatpush1.bf16.msra.mxu0 %v321
    %467 = vmatprep.subr.bf16.mxu0 0
    %468 = vmatpush1.bf16.msra.mxu0 %v320
    %469 = vmatprep.subr.bf16.mxu0 0
    %470 = vmatpush1.bf16.msra.mxu0 %v319
    %471 = vmatprep.subr.bf16.mxu0 0
    %472 = vmatpush1.bf16.msra.mxu0 %v318
    %473 = vmatprep.subr.bf16.mxu0 0
    %474 = vmatpush1.bf16.msra.mxu0 %v317
    %475 = vmatprep.subr.bf16.mxu0 0
    %476 = vmatpush1.bf16.msra.mxu0 %v316
    %477 = vmatprep.subr.bf16.mxu0 0
    %478 = vmatpush2.bf16.msra.mxu0 0
    %479 = vmatprep.subr.bf16.mxu0 0
    %480 = vmatpush2.bf16.msra.mxu0 0
    %481 = vmatprep.subr.bf16.mxu0 0
    %482 = vmatpush2.bf16.msra.mxu0 0
    %483 = vmatprep.subr.bf16.mxu0 0
    %484 = vmatpush2.bf16.msra.mxu0 0
    %485 = vmatprep.subr.bf16.mxu0 0
    %486 = vmatpush2.bf16.msra.mxu0 0
    %487 = vmatprep.subr.bf16.mxu0 0
    %488 = vmatpush2.bf16.msra.mxu0 0
    %489 = vmatprep.subr.bf16.mxu0 0
    %490 = vmatpush2.bf16.msra.mxu0 0
    %491 = vmatprep.subr.bf16.mxu0 0
    %492 = vmatpush2.bf16.msra.mxu0 0
    %493 = vmatprep.mubr.bf16.mxu0 0
    %494 = vmatmul.mubr.bf16.gmra.mxu0 %v460
    %v495 = vpop.f32.mrf.mxu0
    %v496 = vadd.f32 0.0, %v495
    %v497 = vpop.f32.mrf.mxu0
    %v498 = vpop.f32.mrf.mxu0
    %v499 = vpop.f32.mrf.mxu0
    %500 = vdwg.mxu0
    %v501 = vlaneseq
    %v502 = vshrl.u32 %v501, 7
    %v503 = vsub.s32 0, %v502
    %v504 = vrot.slane %v496, %v503
    %v505 = vmul.f32 %v376, %v504
    %v506 = vld [vmem:[#allocation7 + $0x82] sm:$0x1]
    %v507 = vlaneseq
    %v508 = vshrl.u32 %v507, 7
    %v509 = vsub.s32 0, %v508
    %v510 = vrot.slane %v506, %v509
    %v511 = vadd.f32 %v505, %v510
    %v512 = vpack.c.bf16 %v511, %v511
    %v513 = vld [vmem:[#allocation5 + $0x80] sm:$0xf]
    %v514 = vld [vmem:[#allocation5 + $0x84] sm:$0xf]
    %v515 = vld [vmem:[#allocation5 + $0x88] sm:$0xf]
    %v516 = vld [vmem:[#allocation5 + $0x8c] sm:$0xf]
    %v517 = vld [vmem:[#allocation5 + $0x90] sm:$0xf]
    %v518 = vld [vmem:[#allocation5 + $0x94] sm:$0xf]
    %v519 = vld [vmem:[#allocation5 + $0x98] sm:$0xf]
    %v520 = vld [vmem:[#allocation5 + $0x9c] sm:$0xf]
    %v521 = vld [vmem:[#allocation5 + $0xa0] sm:$0xf]
    %v522 = vld [vmem:[#allocation5 + $0xa4] sm:$0xf]
    %v523 = vld [vmem:[#allocation5 + $0xa8] sm:$0xf]
    %v524 = vld [vmem:[#allocation5 + $0xac] sm:$0xf]
    %v525 = vld [vmem:[#allocation5 + $0xb0] sm:$0xf]
    %v526 = vld [vmem:[#allocation5 + $0xb4] sm:$0xf]
    %v527 = vld [vmem:[#allocation5 + $0xb8] sm:$0xf]
    %v528 = vld [vmem:[#allocation5 + $0xbc] sm:$0xf]
    %v529 = vld [vmem:[#allocation7 + $0x108] sm:$0x1]
    %v530 = vlaneseq
    %v531 = vshrl.u32 %v530, 7
    %v532 = vsub.s32 0, %v531
    %v533 = vrot.slane %v529, %v532
    %v550 = vunpack.c.l.b16 %v513
    %v551 = vunpack.c.l.b16 %v514
    %v552 = vunpack.c.l.b16 %v515
    %v553 = vunpack.c.l.b16 %v516
    %v554 = vunpack.c.l.b16 %v517
    %v555 = vunpack.c.l.b16 %v518
    %v556 = vunpack.c.l.b16 %v519
    %v557 = vunpack.c.l.b16 %v520
    %v558 = vunpack.c.l.b16 %v521
    %v559 = vunpack.c.l.b16 %v522
    %v560 = vunpack.c.l.b16 %v523
    %v561 = vunpack.c.l.b16 %v524
    %v562 = vunpack.c.l.b16 %v525
    %v563 = vunpack.c.l.b16 %v526
    %v564 = vunpack.c.l.b16 %v527
    %v565 = vunpack.c.l.b16 %v528
    %v566 = vpack.c.b16 %v551, %v550
    %v567 = vpack.c.b16 %v553, %v552
    %v568 = vpack.c.b16 %v555, %v554
    %v569 = vpack.c.b16 %v557, %v556
    %v570 = vpack.c.b16 %v559, %v558
    %v571 = vpack.c.b16 %v561, %v560
    %v572 = vpack.c.b16 %v563, %v562
    %v573 = vpack.c.b16 %v565, %v564
    %582 = vmatprep.subr.bf16.mxu0 0
    %583 = vmatpush1.bf16.msra.mxu0 %v573
    %584 = vmatprep.subr.bf16.mxu0 0
    %585 = vmatpush1.bf16.msra.mxu0 %v572
    %586 = vmatprep.subr.bf16.mxu0 0
    %587 = vmatpush1.bf16.msra.mxu0 %v571
    %588 = vmatprep.subr.bf16.mxu0 0
    %589 = vmatpush1.bf16.msra.mxu0 %v570
    %590 = vmatprep.subr.bf16.mxu0 0
    %591 = vmatpush1.bf16.msra.mxu0 %v569
    %592 = vmatprep.subr.bf16.mxu0 0
    %593 = vmatpush1.bf16.msra.mxu0 %v568
    %594 = vmatprep.subr.bf16.mxu0 0
    %595 = vmatpush1.bf16.msra.mxu0 %v567
    %596 = vmatprep.subr.bf16.mxu0 0
    %597 = vmatpush1.bf16.msra.mxu0 %v566
    %598 = vmatprep.subr.bf16.mxu0 0
    %599 = vmatpush2.bf16.msra.mxu0 0
    %600 = vmatprep.subr.bf16.mxu0 0
    %601 = vmatpush2.bf16.msra.mxu0 0
    %602 = vmatprep.subr.bf16.mxu0 0
    %603 = vmatpush2.bf16.msra.mxu0 0
    %604 = vmatprep.subr.bf16.mxu0 0
    %605 = vmatpush2.bf16.msra.mxu0 0
    %606 = vmatprep.subr.bf16.mxu0 0
    %607 = vmatpush2.bf16.msra.mxu0 0
    %608 = vmatprep.subr.bf16.mxu0 0
    %609 = vmatpush2.bf16.msra.mxu0 0
    %610 = vmatprep.subr.bf16.mxu0 0
    %611 = vmatpush2.bf16.msra.mxu0 0
    %612 = vmatprep.subr.bf16.mxu0 0
    %613 = vmatpush2.bf16.msra.mxu0 0
    %614 = vmatprep.mubr.bf16.mxu0 0
    %615 = vmatmul.mubr.bf16.gmra.mxu0 %v512
    %v616 = vpop.f32.mrf.mxu0
    %v617 = vadd.f32 %v533, %v616
    %v618 = vpop.f32.mrf.mxu0
    %v619 = vpop.f32.mrf.mxu0
    %v620 = vpop.f32.mrf.mxu0
    %621 = vdwg.mxu0
    %v622 = vmul.f32 %v617, 0.01
    %v623 = vmax.f32 %v617, %v622
    %v624 = vld [vmem:[#allocation7 + $0x88] sm:$0xff]
    %v625 = vld [vmem:[#allocation7 + $0x90] sm:$0xff]
    %v626 = vld [vmem:[#allocation7 + $0x98] sm:$0xff]
    %v627 = vld [vmem:[#allocation7 + $0xa0] sm:$0xff]
    %v628 = vld [vmem:[#allocation7 + $0xa8] sm:$0xff]
    %v629 = vld [vmem:[#allocation7 + $0xb0] sm:$0xff]
    %v630 = vld [vmem:[#allocation7 + $0xb8] sm:$0xff]
    %v631 = vld [vmem:[#allocation7 + $0xc0] sm:$0xff]
    %v632 = vld [vmem:[#allocation7 + $0xc8] sm:$0xff]
    %v633 = vld [vmem:[#allocation7 + $0xd0] sm:$0xff]
    %v634 = vld [vmem:[#allocation7 + $0xd8] sm:$0xff]
    %v635 = vld [vmem:[#allocation7 + $0xe0] sm:$0xff]
    %v636 = vld [vmem:[#allocation7 + $0xe8] sm:$0xff]
    %v637 = vld [vmem:[#allocation7 + $0xf0] sm:$0xff]
    %v638 = vld [vmem:[#allocation7 + $0xf8] sm:$0xff]
    %v639 = vld [vmem:[#allocation7 + $0x100] sm:$0xff]
    %v640 = vld [vmem:[#allocation5 + $0xc0] sm:$0xf]
    %v641 = vld [vmem:[#allocation5 + $0xc4] sm:$0xf]
    %v642 = vld [vmem:[#allocation5 + $0xc8] sm:$0xf]
    %v643 = vld [vmem:[#allocation5 + $0xcc] sm:$0xf]
    %v644 = vld [vmem:[#allocation5 + $0xd0] sm:$0xf]
    %v645 = vld [vmem:[#allocation5 + $0xd4] sm:$0xf]
    %v646 = vld [vmem:[#allocation5 + $0xd8] sm:$0xf]
    %v647 = vld [vmem:[#allocation5 + $0xdc] sm:$0xf]
    %v648 = vld [vmem:[#allocation5 + $0xe0] sm:$0xf]
    %v649 = vld [vmem:[#allocation5 + $0xe4] sm:$0xf]
    %v650 = vld [vmem:[#allocation5 + $0xe8] sm:$0xf]
    %v651 = vld [vmem:[#allocation5 + $0xec] sm:$0xf]
    %v652 = vld [vmem:[#allocation5 + $0xf0] sm:$0xf]
    %v653 = vld [vmem:[#allocation5 + $0xf4] sm:$0xf]
    %v654 = vld [vmem:[#allocation5 + $0xf8] sm:$0xf]
    %v655 = vld [vmem:[#allocation5 + $0xfc] sm:$0xf]
    %v656 = vsel %vm204, %v623, 0.0
    %v657 = vrot.slane %v656, 4
    %v658 = vadd.f32 %v656, %v657
    %v659 = vrot.slane %v658, 2
    %v660 = vadd.f32 %v658, %v659
    %v661 = vrot.slane %v660, 1
    %v662 = vadd.f32 %v660, %v661
    %663 = vmatprep.subr.mxu0 0.0
    %664 = vmatpush1.msra.mxu0 %v639
    %665 = vmatprep.subr.mxu0 0.0
    %666 = vmatpush1.msra.mxu0 %v638
    %667 = vmatprep.subr.mxu0 0.0
    %668 = vmatpush1.msra.mxu0 %v637
    %669 = vmatprep.subr.mxu0 0.0
    %670 = vmatpush1.msra.mxu0 %v636
    %671 = vmatprep.subr.mxu0 0.0
    %672 = vmatpush1.msra.mxu0 %v635
    %673 = vmatprep.subr.mxu0 0.0
    %674 = vmatpush1.msra.mxu0 %v634
    %675 = vmatprep.subr.mxu0 0.0
    %676 = vmatpush1.msra.mxu0 %v633
    %677 = vmatprep.subr.mxu0 0.0
    %678 = vmatpush1.msra.mxu0 %v632
    %679 = vmatprep.subr.mxu0 0.0
    %680 = vmatpush1.msra.mxu0 %v631
    %681 = vmatprep.subr.mxu0 0.0
    %682 = vmatpush1.msra.mxu0 %v630
    %683 = vmatprep.subr.mxu0 0.0
    %684 = vmatpush1.msra.mxu0 %v629
    %685 = vmatprep.subr.mxu0 0.0
    %686 = vmatpush1.msra.mxu0 %v628
    %687 = vmatprep.subr.mxu0 0.0
    %688 = vmatpush1.msra.mxu0 %v627
    %689 = vmatprep.subr.mxu0 0.0
    %690 = vmatpush1.msra.mxu0 %v626
    %691 = vmatprep.subr.mxu0 0.0
    %692 = vmatpush1.msra.mxu0 %v625
    %693 = vmatprep.subr.mxu0 0.0
    %694 = vmatpush1.msra.mxu0 %v624
    %695 = vmatprep.subr.mxu0 0.0
    %696 = vmatpush2.msra.mxu0 0.0
    %697 = vmatprep.subr.mxu0 0.0
    %698 = vmatpush2.msra.mxu0 0.0
    %699 = vmatprep.subr.mxu0 0.0
    %700 = vmatpush2.msra.mxu0 0.0
    %701 = vmatprep.subr.mxu0 0.0
    %702 = vmatpush2.msra.mxu0 0.0
    %703 = vmatprep.subr.mxu0 0.0
    %704 = vmatpush2.msra.mxu0 0.0
    %705 = vmatprep.subr.mxu0 0.0
    %706 = vmatpush2.msra.mxu0 0.0
    %707 = vmatprep.subr.mxu0 0.0
    %708 = vmatpush2.msra.mxu0 0.0
    %709 = vmatprep.subr.mxu0 0.0
    %710 = vmatpush2.msra.mxu0 0.0
    %711 = vmatprep.subr.mxu0 0.0
    %712 = vmatpush2.msra.mxu0 0.0
    %713 = vmatprep.subr.mxu0 0.0
    %714 = vmatpush2.msra.mxu0 0.0
    %715 = vmatprep.subr.mxu0 0.0
    %716 = vmatpush2.msra.mxu0 0.0
    %717 = vmatprep.subr.mxu0 0.0
    %718 = vmatpush2.msra.mxu0 0.0
    %719 = vmatprep.subr.mxu0 0.0
    %720 = vmatpush2.msra.mxu0 0.0
    %721 = vmatprep.subr.mxu0 0.0
    %722 = vmatpush2.msra.mxu0 0.0
    %723 = vmatprep.subr.mxu0 0.0
    %724 = vmatpush2.msra.mxu0 0.0
    %725 = vmatprep.subr.mxu0 0.0
    %726 = vmatpush2.msra.mxu0 0.0
    %727 = vmatprep.mubr.f32.mxu0 0.0
    %728 = vmatmul.mubr.f32.gmra.mxu0 %v662
    %v729 = vpop.f32.mrf.mxu0
    %v730 = vadd.f32 0.0, %v729
    %v731 = vpop.f32.mrf.mxu0
    %732 = vdwg.mxu0
    %v733 = vmul.f32 %v730, 0.125
    %v734 = vpack.c.bf16 %v733, %v733
    %v751 = vunpack.c.l.b16 %v640
    %v752 = vunpack.c.l.b16 %v641
    %v753 = vunpack.c.l.b16 %v642
    %v754 = vunpack.c.l.b16 %v643
    %v755 = vunpack.c.l.b16 %v644
    %v756 = vunpack.c.l.b16 %v645
    %v757 = vunpack.c.l.b16 %v646
    %v758 = vunpack.c.l.b16 %v647
    %v759 = vunpack.c.l.b16 %v648
    %v760 = vunpack.c.l.b16 %v649
    %v761 = vunpack.c.l.b16 %v650
    %v762 = vunpack.c.l.b16 %v651
    %v763 = vunpack.c.l.b16 %v652
    %v764 = vunpack.c.l.b16 %v653
    %v765 = vunpack.c.l.b16 %v654
    %v766 = vunpack.c.l.b16 %v655
    %v767 = vpack.c.b16 %v752, %v751
    %v768 = vpack.c.b16 %v754, %v753
    %v769 = vpack.c.b16 %v756, %v755
    %v770 = vpack.c.b16 %v758, %v757
    %v771 = vpack.c.b16 %v760, %v759
    %v772 = vpack.c.b16 %v762, %v761
    %v773 = vpack.c.b16 %v764, %v763
    %v774 = vpack.c.b16 %v766, %v765
    %783 = vmatprep.subr.bf16.mxu0 0
    %784 = vmatpush1.bf16.msra.mxu0 %v774
    %785 = vmatprep.subr.bf16.mxu0 0
    %786 = vmatpush1.bf16.msra.mxu0 %v773
    %787 = vmatprep.subr.bf16.mxu0 0
    %788 = vmatpush1.bf16.msra.mxu0 %v772
    %789 = vmatprep.subr.bf16.mxu0 0
    %790 = vmatpush1.bf16.msra.mxu0 %v771
    %791 = vmatprep.subr.bf16.mxu0 0
    %792 = vmatpush1.bf16.msra.mxu0 %v770
    %793 = vmatprep.subr.bf16.mxu0 0
    %794 = vmatpush1.bf16.msra.mxu0 %v769
    %795 = vmatprep.subr.bf16.mxu0 0
    %796 = vmatpush1.bf16.msra.mxu0 %v768
    %797 = vmatprep.subr.bf16.mxu0 0
    %798 = vmatpush1.bf16.msra.mxu0 %v767
    %799 = vmatprep.subr.bf16.mxu0 0
    %800 = vmatpush2.bf16.msra.mxu0 0
    %801 = vmatprep.subr.bf16.mxu0 0
    %802 = vmatpush2.bf16.msra.mxu0 0
    %803 = vmatprep.subr.bf16.mxu0 0
    %804 = vmatpush2.bf16.msra.mxu0 0
    %805 = vmatprep.subr.bf16.mxu0 0
    %806 = vmatpush2.bf16.msra.mxu0 0
    %807 = vmatprep.subr.bf16.mxu0 0
    %808 = vmatpush2.bf16.msra.mxu0 0
    %809 = vmatprep.subr.bf16.mxu0 0
    %810 = vmatpush2.bf16.msra.mxu0 0
    %811 = vmatprep.subr.bf16.mxu0 0
    %812 = vmatpush2.bf16.msra.mxu0 0
    %813 = vmatprep.subr.bf16.mxu0 0
    %814 = vmatpush2.bf16.msra.mxu0 0
    %815 = vmatprep.mubr.bf16.mxu0 0
    %816 = vmatmul.mubr.bf16.gmra.mxu0 %v734
    %v817 = vpop.f32.mrf.mxu0
    %v818 = vadd.f32 0.0, %v817
    %v819 = vpop.f32.mrf.mxu0
    %v820 = vpop.f32.mrf.mxu0
    %v821 = vpop.f32.mrf.mxu0
    %822 = vdwg.mxu0
    %v823 = vlaneseq
    %v824 = vshrl.u32 %v823, 7
    %v825 = vsub.s32 0, %v824
    %v826 = vrot.slane %v818, %v825
    %v827 = vsub.f32 %v623, %v826
    %v828 = vmul.f32 %v827, %v827
    %v829 = vsel %vm204, %v828, 0.0
    %v830 = vrot.slane %v829, 4
    %v831 = vadd.f32 %v829, %v830
    %v832 = vrot.slane %v831, 2
    %v833 = vadd.f32 %v831, %v832
    %v834 = vrot.slane %v833, 1
    %v835 = vadd.f32 %v833, %v834
    %836 = vmatprep.subr.mxu0 0.0
    %837 = vmatpush1.msra.mxu0 %v639
    %838 = vmatprep.subr.mxu0 0.0
    %839 = vmatpush1.msra.mxu0 %v638
    %840 = vmatprep.subr.mxu0 0.0
    %841 = vmatpush1.msra.mxu0 %v637
    %842 = vmatprep.subr.mxu0 0.0
    %843 = vmatpush1.msra.mxu0 %v636
    %844 = vmatprep.subr.mxu0 0.0
    %845 = vmatpush1.msra.mxu0 %v635
    %846 = vmatprep.subr.mxu0 0.0
    %847 = vmatpush1.msra.mxu0 %v634
    %848 = vmatprep.subr.mxu0 0.0
    %849 = vmatpush1.msra.mxu0 %v633
    %850 = vmatprep.subr.mxu0 0.0
    %851 = vmatpush1.msra.mxu0 %v632
    %852 = vmatprep.subr.mxu0 0.0
    %853 = vmatpush1.msra.mxu0 %v631
    %854 = vmatprep.subr.mxu0 0.0
    %855 = vmatpush1.msra.mxu0 %v630
    %856 = vmatprep.subr.mxu0 0.0
    %857 = vmatpush1.msra.mxu0 %v629
    %858 = vmatprep.subr.mxu0 0.0
    %859 = vmatpush1.msra.mxu0 %v628
    %860 = vmatprep.subr.mxu0 0.0
    %861 = vmatpush1.msra.mxu0 %v627
    %862 = vmatprep.subr.mxu0 0.0
    %863 = vmatpush1.msra.mxu0 %v626
    %864 = vmatprep.subr.mxu0 0.0
    %865 = vmatpush1.msra.mxu0 %v625
    %866 = vmatprep.subr.mxu0 0.0
    %867 = vmatpush1.msra.mxu0 %v624
    %868 = vmatprep.subr.mxu0 0.0
    %869 = vmatpush2.msra.mxu0 0.0
    %870 = vmatprep.subr.mxu0 0.0
    %871 = vmatpush2.msra.mxu0 0.0
    %872 = vmatprep.subr.mxu0 0.0
    %873 = vmatpush2.msra.mxu0 0.0
    %874 = vmatprep.subr.mxu0 0.0
    %875 = vmatpush2.msra.mxu0 0.0
    %876 = vmatprep.subr.mxu0 0.0
    %877 = vmatpush2.msra.mxu0 0.0
    %878 = vmatprep.subr.mxu0 0.0
    %879 = vmatpush2.msra.mxu0 0.0
    %880 = vmatprep.subr.mxu0 0.0
    %881 = vmatpush2.msra.mxu0 0.0
    %882 = vmatprep.subr.mxu0 0.0
    %883 = vmatpush2.msra.mxu0 0.0
    %884 = vmatprep.subr.mxu0 0.0
    %885 = vmatpush2.msra.mxu0 0.0
    %886 = vmatprep.subr.mxu0 0.0
    %887 = vmatpush2.msra.mxu0 0.0
    %888 = vmatprep.subr.mxu0 0.0
    %889 = vmatpush2.msra.mxu0 0.0
    %890 = vmatprep.subr.mxu0 0.0
    %891 = vmatpush2.msra.mxu0 0.0
    %892 = vmatprep.subr.mxu0 0.0
    %893 = vmatpush2.msra.mxu0 0.0
    %894 = vmatprep.subr.mxu0 0.0
    %895 = vmatpush2.msra.mxu0 0.0
    %896 = vmatprep.subr.mxu0 0.0
    %897 = vmatpush2.msra.mxu0 0.0
    %898 = vmatprep.subr.mxu0 0.0
    %899 = vmatpush2.msra.mxu0 0.0
    %900 = vmatprep.mubr.f32.mxu0 0.0
    %901 = vmatmul.mubr.f32.gmra.mxu0 %v835
    %v902 = vpop.f32.mrf.mxu0
    %v903 = vadd.f32 0.0, %v902
    %v904 = vpop.f32.mrf.mxu0
    %905 = vdwg.mxu0
    %v906 = vmul.f32 %v903, 0.125
    %v907 = vadd.f32 %v906, 1e-05
    %v908 = vrsqrt.pop %v907
    %v909 = vld [vmem:[#allocation7 + $0x109] sm:$0x1]
    %v910 = vmul.f32 %v908, %v909
    %v911 = vpack.c.bf16 %v910, %v910
    %912 = vmatprep.subr.bf16.mxu0 0
    %913 = vmatpush1.bf16.msra.mxu0 %v774
    %914 = vmatprep.subr.bf16.mxu0 0
    %915 = vmatpush1.bf16.msra.mxu0 %v773
    %916 = vmatprep.subr.bf16.mxu0 0
    %917 = vmatpush1.bf16.msra.mxu0 %v772
    %918 = vmatprep.subr.bf16.mxu0 0
    %919 = vmatpush1.bf16.msra.mxu0 %v771
    %920 = vmatprep.subr.bf16.mxu0 0
    %921 = vmatpush1.bf16.msra.mxu0 %v770
    %922 = vmatprep.subr.bf16.mxu0 0
    %923 = vmatpush1.bf16.msra.mxu0 %v769
    %924 = vmatprep.subr.bf16.mxu0 0
    %925 = vmatpush1.bf16.msra.mxu0 %v768
    %926 = vmatprep.subr.bf16.mxu0 0
    %927 = vmatpush1.bf16.msra.mxu0 %v767
    %928 = vmatprep.subr.bf16.mxu0 0
    %929 = vmatpush2.bf16.msra.mxu0 0
    %930 = vmatprep.subr.bf16.mxu0 0
    %931 = vmatpush2.bf16.msra.mxu0 0
    %932 = vmatprep.subr.bf16.mxu0 0
    %933 = vmatpush2.bf16.msra.mxu0 0
    %934 = vmatprep.subr.bf16.mxu0 0
    %935 = vmatpush2.bf16.msra.mxu0 0
    %936 = vmatprep.subr.bf16.mxu0 0
    %937 = vmatpush2.bf16.msra.mxu0 0
    %938 = vmatprep.subr.bf16.mxu0 0
    %939 = vmatpush2.bf16.msra.mxu0 0
    %940 = vmatprep.subr.bf16.mxu0 0
    %941 = vmatpush2.bf16.msra.mxu0 0
    %942 = vmatprep.subr.bf16.mxu0 0
    %943 = vmatpush2.bf16.msra.mxu0 0
    %944 = vmatprep.mubr.bf16.mxu0 0
    %945 = vmatmul.mubr.bf16.gmra.mxu0 %v911
    %v946 = vpop.f32.mrf.mxu0
    %v947 = vadd.f32 0.0, %v946
    %v948 = vpop.f32.mrf.mxu0
    %v949 = vpop.f32.mrf.mxu0
    %v950 = vpop.f32.mrf.mxu0
    %951 = vdwg.mxu0
    %v952 = vlaneseq
    %v953 = vshrl.u32 %v952, 7
    %v954 = vsub.s32 0, %v953
    %v955 = vrot.slane %v947, %v954
    %v956 = vmul.f32 %v827, %v955
    %v957 = vld [vmem:[#allocation7 + $0x10a] sm:$0x1]
    %v958 = vlaneseq
    %v959 = vshrl.u32 %v958, 7
    %v960 = vsub.s32 0, %v959
    %v961 = vrot.slane %v957, %v960
    %v962 = vadd.f32 %v956, %v961
    %v963 = vpack.c.bf16 %v962, %v962
    %v964 = vld [vmem:[#allocation5 + $0x100] sm:$0xf]
    %v965 = vld [vmem:[#allocation5 + $0x104] sm:$0xf]
    %v966 = vld [vmem:[#allocation5 + $0x108] sm:$0xf]
    %v967 = vld [vmem:[#allocation5 + $0x10c] sm:$0xf]
    %v968 = vld [vmem:[#allocation5 + $0x110] sm:$0xf]
    %v969 = vld [vmem:[#allocation5 + $0x114] sm:$0xf]
    %v970 = vld [vmem:[#allocation5 + $0x118] sm:$0xf]
    %v971 = vld [vmem:[#allocation5 + $0x11c] sm:$0xf]
    %v972 = vld [vmem:[#allocation5 + $0x120] sm:$0xf]
    %v973 = vld [vmem:[#allocation5 + $0x124] sm:$0xf]
    %v974 = vld [vmem:[#allocation5 + $0x128] sm:$0xf]
    %v975 = vld [vmem:[#allocation5 + $0x12c] sm:$0xf]
    %v976 = vld [vmem:[#allocation5 + $0x130] sm:$0xf]
    %v977 = vld [vmem:[#allocation5 + $0x134] sm:$0xf]
    %v978 = vld [vmem:[#allocation5 + $0x138] sm:$0xf]
    %v979 = vld [vmem:[#allocation5 + $0x13c] sm:$0xf]
    %v980 = vld [vmem:[#allocation7 + $0x198] sm:$0x1]
    %v981 = vlaneseq
    %v982 = vshrl.u32 %v981, 7
    %v983 = vsub.s32 0, %v982
    %v984 = vrot.slane %v980, %v983
    %v1001 = vunpack.c.l.b16 %v964
    %v1002 = vunpack.c.l.b16 %v965
    %v1003 = vunpack.c.l.b16 %v966
    %v1004 = vunpack.c.l.b16 %v967
    %v1005 = vunpack.c.l.b16 %v968
    %v1006 = vunpack.c.l.b16 %v969
    %v1007 = vunpack.c.l.b16 %v970
    %v1008 = vunpack.c.l.b16 %v971
    %v1009 = vunpack.c.l.b16 %v972
    %v1010 = vunpack.c.l.b16 %v973
    %v1011 = vunpack.c.l.b16 %v974
    %v1012 = vunpack.c.l.b16 %v975
    %v1013 = vunpack.c.l.b16 %v976
    %v1014 = vunpack.c.l.b16 %v977
    %v1015 = vunpack.c.l.b16 %v978
    %v1016 = vunpack.c.l.b16 %v979
    %v1017 = vpack.c.b16 %v1002, %v1001
    %v1018 = vpack.c.b16 %v1004, %v1003
    %v1019 = vpack.c.b16 %v1006, %v1005
    %v1020 = vpack.c.b16 %v1008, %v1007
    %v1021 = vpack.c.b16 %v1010, %v1009
    %v1022 = vpack.c.b16 %v1012, %v1011
    %v1023 = vpack.c.b16 %v1014, %v1013
    %v1024 = vpack.c.b16 %v1016, %v1015
    %1033 = vmatprep.subr.bf16.mxu0 0
    %1034 = vmatpush1.bf16.msra.mxu0 %v1024
    %1035 = vmatprep.subr.bf16.mxu0 0
    %1036 = vmatpush1.bf16.msra.mxu0 %v1023
    %1037 = vmatprep.subr.bf16.mxu0 0
    %1038 = vmatpush1.bf16.msra.mxu0 %v1022
    %1039 = vmatprep.subr.bf16.mxu0 0
    %1040 = vmatpush1.bf16.msra.mxu0 %v1021
    %1041 = vmatprep.subr.bf16.mxu0 0
    %1042 = vmatpush1.bf16.msra.mxu0 %v1020
    %1043 = vmatprep.subr.bf16.mxu0 0
    %1044 = vmatpush1.bf16.msra.mxu0 %v1019
    %1045 = vmatprep.subr.bf16.mxu0 0
    %1046 = vmatpush1.bf16.msra.mxu0 %v1018
    %1047 = vmatprep.subr.bf16.mxu0 0
    %1048 = vmatpush1.bf16.msra.mxu0 %v1017
    %1049 = vmatprep.subr.bf16.mxu0 0
    %1050 = vmatpush2.bf16.msra.mxu0 0
    %1051 = vmatprep.subr.bf16.mxu0 0
    %1052 = vmatpush2.bf16.msra.mxu0 0
    %1053 = vmatprep.subr.bf16.mxu0 0
    %1054 = vmatpush2.bf16.msra.mxu0 0
    %1055 = vmatprep.subr.bf16.mxu0 0
    %1056 = vmatpush2.bf16.msra.mxu0 0
    %1057 = vmatprep.subr.bf16.mxu0 0
    %1058 = vmatpush2.bf16.msra.mxu0 0
    %1059 = vmatprep.subr.bf16.mxu0 0
    %1060 = vmatpush2.bf16.msra.mxu0 0
    %1061 = vmatprep.subr.bf16.mxu0 0
    %1062 = vmatpush2.bf16.msra.mxu0 0
    %1063 = vmatprep.subr.bf16.mxu0 0
    %1064 = vmatpush2.bf16.msra.mxu0 0
    %1065 = vmatprep.mubr.bf16.mxu0 0
    %1066 = vmatmul.mubr.bf16.gmra.mxu0 %v963
    %v1067 = vpop.f32.mrf.mxu0
    %v1068 = vadd.f32 %v984, %v1067
    %v1069 = vpop.f32.mrf.mxu0
    %v1070 = vpop.f32.mrf.mxu0
    %v1071 = vpop.f32.mrf.mxu0
    %1072 = vdwg.mxu0
    %v1073 = vmax.f32 %v1068, 0.0
    %v1074 = vand.u32 2147483647, %v1068
    %v1075 = vsub.f32 0.0, %v1074
    %v1076 = vmul.f32 %v1075, 1.442695
    %v1077 = vpow.pop %v1076
    %v1078 = vadd.f32 %v1077, 1.0
    %v1079 = vlog2.pop %v1078
    %v1080 = vmul.f32 %v1079, 0.6931472
    %v1081 = vmul.f32 -0.5, %v1077
    %v1082 = vadd.f32 %v1081, 1.0
    %v1083 = vmul.f32 %v1082, %v1077
    %v1084 = vand.u32 2147483647, %v1077
    %vm1085 = vcmp.lt.f32.partialorder %v1084, 0.0004427343
    %v1086 = vsel %vm1085, %v1083, %v1080
    %v1087 = vadd.f32 %v1073, %v1086
    %v1088 = vmul.f32 %v1087, 0.5
    %v1089 = vmul.f32 %v1088, 1.442695
    %v1090 = vpow.pop %v1089
    %1092 = vrot.lane.b32.xlu0 %v1090, 56
    %v1093 = vpop.permute.xlu0 %1092
    %v1095 = vmul.f32 %v58, %v1093
    %1097 = vrot.lane.b32.xlu0 %v1068, 64
    %v1098 = vpop.permute.xlu0 %1097
    %v1100 = vadd.f32 %v1095, %v1098
    %v1101 = vpack.c.bf16 %v1100, %v1100
    %v1102 = vld [vmem:[#allocation5 + $0x140] sm:$0xf]
    %v1103 = vld [vmem:[#allocation7 + $0x199] sm:$0x1]
    %v1104 = vlaneseq
    %v1105 = vshrl.u32 %v1104, 7
    %v1106 = vsub.s32 0, %v1105
    %v1107 = vrot.slane %v1103, %v1106
    %1109 = vrot.lane.b32.xlu0 %v1101, 64
    %v1110 = vpop.permute.xlu0 %1109
    %vm1111 = vcmask 64512
    %v1113 = vsel %vm1111, %v1110, 0
    %vm1115 = vcmask 1043456
    %v1117 = vsel %vm1115, %v1102, 0
    %1119 = vmatprep.subr.bf16.mxu0 0
    %1120 = vmatpush1.bf16.msra.mxu0 0
    %1121 = vmatprep.subr.bf16.mxu0 0
    %1122 = vmatpush1.bf16.msra.mxu0 0
    %1123 = vmatprep.subr.bf16.mxu0 0
    %1124 = vmatpush1.bf16.msra.mxu0 0
    %1125 = vmatprep.subr.bf16.mxu0 0
    %1126 = vmatpush1.bf16.msra.mxu0 0
    %1127 = vmatprep.subr.bf16.mxu0 0
    %1128 = vmatpush1.bf16.msra.mxu0 0
    %1129 = vmatprep.subr.bf16.mxu0 0
    %1130 = vmatpush1.bf16.msra.mxu0 0
    %1131 = vmatprep.subr.bf16.mxu0 0
    %1132 = vmatpush1.bf16.msra.mxu0 0
    %1133 = vmatprep.subr.bf16.mxu0 0
    %1134 = vmatpush1.bf16.msra.mxu0 %v1117
    %1135 = vmatprep.subr.bf16.mxu0 0
    %1136 = vmatpush2.bf16.msra.mxu0 0
    %1137 = vmatprep.subr.bf16.mxu0 0
    %1138 = vmatpush2.bf16.msra.mxu0 0
    %1139 = vmatprep.subr.bf16.mxu0 0
    %1140 = vmatpush2.bf16.msra.mxu0 0
    %1141 = vmatprep.subr.bf16.mxu0 0
    %1142 = vmatpush2.bf16.msra.mxu0 0
    %1143 = vmatprep.subr.bf16.mxu0 0
    %1144 = vmatpush2.bf16.msra.mxu0 0
    %1145 = vmatprep.subr.bf16.mxu0 0
    %1146 = vmatpush2.bf16.msra.mxu0 0
    %1147 = vmatprep.subr.bf16.mxu0 0
    %1148 = vmatpush2.bf16.msra.mxu0 0
    %1149 = vmatprep.subr.bf16.mxu0 0
    %1150 = vmatpush2.bf16.msra.mxu0 0
    %1151 = vmatprep.mubr.bf16.mxu0 0
    %1152 = vmatmul.mubr.bf16.gmra.mxu0 %v1113
    %v1153 = vpop.f32.mrf.mxu0
    %v1154 = vadd.f32 %v1107, %v1153
    %v1155 = vpop.f32.mrf.mxu0
    %v1156 = vpop.f32.mrf.mxu0
    %v1157 = vpop.f32.mrf.mxu0
    %1158 = vdwg.mxu0
    %v1159 = vpack.c.bf16 %v1154, %v1154
    %v1160 = vld [vmem:[#allocation5 + $0x148] sm:$0xf]
    %v1161 = vld [vmem:[#allocation5 + $0x14c] sm:$0xf]
    %v1162 = vld [vmem:[#allocation5 + $0x150] sm:$0xf]
    %v1163 = vld [vmem:[#allocation5 + $0x154] sm:$0xf]
    %v1164 = vld [vmem:[#allocation5 + $0x158] sm:$0xf]
    %v1165 = vld [vmem:[#allocation5 + $0x15c] sm:$0xf]
    %v1166 = vld [vmem:[#allocation5 + $0x160] sm:$0xf]
    %v1167 = vld [vmem:[#allocation5 + $0x164] sm:$0xf]
    %v1168 = vld [vmem:[#allocation5 + $0x168] sm:$0xf]
    %v1169 = vld [vmem:[#allocation5 + $0x16c] sm:$0xf]
    %v1170 = vld [vmem:[#allocation5 + $0x170] sm:$0xf]
    %v1171 = vld [vmem:[#allocation5 + $0x174] sm:$0xf]
    %v1172 = vld [vmem:[#allocation5 + $0x178] sm:$0xf]
    %v1173 = vld [vmem:[#allocation5 + $0x17c] sm:$0xf]
    %v1174 = vld [vmem:[#allocation5 + $0x180] sm:$0xf]
    %v1175 = vld [vmem:[#allocation5 + $0x184] sm:$0xf]
    %v1176 = vld [vmem:[#allocation7 + $0x190] sm:$0x1]
    %v1177 = vlaneseq
    %v1178 = vshrl.u32 %v1177, 7
    %v1179 = vsub.s32 0, %v1178
    %v1180 = vrot.slane %v1176, %v1179
    %v1197 = vunpack.c.l.b16 %v1160
    %v1198 = vunpack.c.l.b16 %v1161
    %v1199 = vunpack.c.l.b16 %v1162
    %v1200 = vunpack.c.l.b16 %v1163
    %v1201 = vunpack.c.l.b16 %v1164
    %v1202 = vunpack.c.l.b16 %v1165
    %v1203 = vunpack.c.l.b16 %v1166
    %v1204 = vunpack.c.l.b16 %v1167
    %v1205 = vunpack.c.l.b16 %v1168
    %v1206 = vunpack.c.l.b16 %v1169
    %v1207 = vunpack.c.l.b16 %v1170
    %v1208 = vunpack.c.l.b16 %v1171
    %v1209 = vunpack.c.l.b16 %v1172
    %v1210 = vunpack.c.l.b16 %v1173
    %v1211 = vunpack.c.l.b16 %v1174
    %v1212 = vunpack.c.l.b16 %v1175
    %v1213 = vpack.c.b16 %v1198, %v1197
    %v1214 = vpack.c.b16 %v1200, %v1199
    %v1215 = vpack.c.b16 %v1202, %v1201
    %v1216 = vpack.c.b16 %v1204, %v1203
    %v1217 = vpack.c.b16 %v1206, %v1205
    %v1218 = vpack.c.b16 %v1208, %v1207
    %v1219 = vpack.c.b16 %v1210, %v1209
    %v1220 = vpack.c.b16 %v1212, %v1211
    %1229 = vmatprep.subr.bf16.mxu0 0
    %1230 = vmatpush1.bf16.msra.mxu0 %v1220
    %1231 = vmatprep.subr.bf16.mxu0 0
    %1232 = vmatpush1.bf16.msra.mxu0 %v1219
    %1233 = vmatprep.subr.bf16.mxu0 0
    %1234 = vmatpush1.bf16.msra.mxu0 %v1218
    %1235 = vmatprep.subr.bf16.mxu0 0
    %1236 = vmatpush1.bf16.msra.mxu0 %v1217
    %1237 = vmatprep.subr.bf16.mxu0 0
    %1238 = vmatpush1.bf16.msra.mxu0 %v1216
    %1239 = vmatprep.subr.bf16.mxu0 0
    %1240 = vmatpush1.bf16.msra.mxu0 %v1215
    %1241 = vmatprep.subr.bf16.mxu0 0
    %1242 = vmatpush1.bf16.msra.mxu0 %v1214
    %1243 = vmatprep.subr.bf16.mxu0 0
    %1244 = vmatpush1.bf16.msra.mxu0 %v1213
    %1245 = vmatprep.subr.bf16.mxu0 0
    %1246 = vmatpush2.bf16.msra.mxu0 0
    %1247 = vmatprep.subr.bf16.mxu0 0
    %1248 = vmatpush2.bf16.msra.mxu0 0
    %1249 = vmatprep.subr.bf16.mxu0 0
    %1250 = vmatpush2.bf16.msra.mxu0 0
    %1251 = vmatprep.subr.bf16.mxu0 0
    %1252 = vmatpush2.bf16.msra.mxu0 0
    %1253 = vmatprep.subr.bf16.mxu0 0
    %1254 = vmatpush2.bf16.msra.mxu0 0
    %1255 = vmatprep.subr.bf16.mxu0 0
    %1256 = vmatpush2.bf16.msra.mxu0 0
    %1257 = vmatprep.subr.bf16.mxu0 0
    %1258 = vmatpush2.bf16.msra.mxu0 0
    %1259 = vmatprep.subr.bf16.mxu0 0
    %1260 = vmatpush2.bf16.msra.mxu0 0
    %1261 = vmatprep.mubr.bf16.mxu0 0
    %1262 = vmatmul.mubr.bf16.gmra.mxu0 %v1159
    %v1263 = vpop.f32.mrf.mxu0
    %v1264 = vadd.f32 %v1180, %v1263
    %v1265 = vpop.f32.mrf.mxu0
    %v1266 = vpop.f32.mrf.mxu0
    %v1267 = vpop.f32.mrf.mxu0
    %1268 = vdwg.mxu0
    %v1269 = vmul.f32 %v1264, 0.01
    %v1270 = vmax.f32 %v1264, %v1269
    %v1271 = vld [vmem:[#allocation7 + $0x110] sm:$0xff]
    %v1272 = vld [vmem:[#allocation7 + $0x118] sm:$0xff]
    %v1273 = vld [vmem:[#allocation7 + $0x120] sm:$0xff]
    %v1274 = vld [vmem:[#allocation7 + $0x128] sm:$0xff]
    %v1275 = vld [vmem:[#allocation7 + $0x130] sm:$0xff]
    %v1276 = vld [vmem:[#allocation7 + $0x138] sm:$0xff]
    %v1277 = vld [vmem:[#allocation7 + $0x140] sm:$0xff]
    %v1278 = vld [vmem:[#allocation7 + $0x148] sm:$0xff]
    %v1279 = vld [vmem:[#allocation7 + $0x150] sm:$0xff]
    %v1280 = vld [vmem:[#allocation7 + $0x158] sm:$0xff]
    %v1281 = vld [vmem:[#allocation7 + $0x160] sm:$0xff]
    %v1282 = vld [vmem:[#allocation7 + $0x168] sm:$0xff]
    %v1283 = vld [vmem:[#allocation7 + $0x170] sm:$0xff]
    %v1284 = vld [vmem:[#allocation7 + $0x178] sm:$0xff]
    %v1285 = vld [vmem:[#allocation7 + $0x180] sm:$0xff]
    %v1286 = vld [vmem:[#allocation7 + $0x188] sm:$0xff]
    %v1287 = vld [vmem:[#allocation5 + $0x188] sm:$0xf]
    %v1288 = vld [vmem:[#allocation5 + $0x18c] sm:$0xf]
    %v1289 = vld [vmem:[#allocation5 + $0x190] sm:$0xf]
    %v1290 = vld [vmem:[#allocation5 + $0x194] sm:$0xf]
    %v1291 = vld [vmem:[#allocation5 + $0x198] sm:$0xf]
    %v1292 = vld [vmem:[#allocation5 + $0x19c] sm:$0xf]
    %v1293 = vld [vmem:[#allocation5 + $0x1a0] sm:$0xf]
    %v1294 = vld [vmem:[#allocation5 + $0x1a4] sm:$0xf]
    %v1295 = vld [vmem:[#allocation5 + $0x1a8] sm:$0xf]
    %v1296 = vld [vmem:[#allocation5 + $0x1ac] sm:$0xf]
    %v1297 = vld [vmem:[#allocation5 + $0x1b0] sm:$0xf]
    %v1298 = vld [vmem:[#allocation5 + $0x1b4] sm:$0xf]
    %v1299 = vld [vmem:[#allocation5 + $0x1b8] sm:$0xf]
    %v1300 = vld [vmem:[#allocation5 + $0x1bc] sm:$0xf]
    %v1301 = vld [vmem:[#allocation5 + $0x1c0] sm:$0xf]
    %v1302 = vld [vmem:[#allocation5 + $0x1c4] sm:$0xf]
    %v1303 = vsel %vm204, %v1270, 0.0
    %v1304 = vrot.slane %v1303, 4
    %v1305 = vadd.f32 %v1303, %v1304
    %v1306 = vrot.slane %v1305, 2
    %v1307 = vadd.f32 %v1305, %v1306
    %v1308 = vrot.slane %v1307, 1
    %v1309 = vadd.f32 %v1307, %v1308
    %1310 = vmatprep.subr.mxu0 0.0
    %1311 = vmatpush1.msra.mxu0 %v1286
    %1312 = vmatprep.subr.mxu0 0.0
    %1313 = vmatpush1.msra.mxu0 %v1285
    %1314 = vmatprep.subr.mxu0 0.0
    %1315 = vmatpush1.msra.mxu0 %v1284
    %1316 = vmatprep.subr.mxu0 0.0
    %1317 = vmatpush1.msra.mxu0 %v1283
    %1318 = vmatprep.subr.mxu0 0.0
    %1319 = vmatpush1.msra.mxu0 %v1282
    %1320 = vmatprep.subr.mxu0 0.0
    %1321 = vmatpush1.msra.mxu0 %v1281
    %1322 = vmatprep.subr.mxu0 0.0
    %1323 = vmatpush1.msra.mxu0 %v1280
    %1324 = vmatprep.subr.mxu0 0.0
    %1325 = vmatpush1.msra.mxu0 %v1279
    %1326 = vmatprep.subr.mxu0 0.0
    %1327 = vmatpush1.msra.mxu0 %v1278
    %1328 = vmatprep.subr.mxu0 0.0
    %1329 = vmatpush1.msra.mxu0 %v1277
    %1330 = vmatprep.subr.mxu0 0.0
    %1331 = vmatpush1.msra.mxu0 %v1276
    %1332 = vmatprep.subr.mxu0 0.0
    %1333 = vmatpush1.msra.mxu0 %v1275
    %1334 = vmatprep.subr.mxu0 0.0
    %1335 = vmatpush1.msra.mxu0 %v1274
    %1336 = vmatprep.subr.mxu0 0.0
    %1337 = vmatpush1.msra.mxu0 %v1273
    %1338 = vmatprep.subr.mxu0 0.0
    %1339 = vmatpush1.msra.mxu0 %v1272
    %1340 = vmatprep.subr.mxu0 0.0
    %1341 = vmatpush1.msra.mxu0 %v1271
    %1342 = vmatprep.subr.mxu0 0.0
    %1343 = vmatpush2.msra.mxu0 0.0
    %1344 = vmatprep.subr.mxu0 0.0
    %1345 = vmatpush2.msra.mxu0 0.0
    %1346 = vmatprep.subr.mxu0 0.0
    %1347 = vmatpush2.msra.mxu0 0.0
    %1348 = vmatprep.subr.mxu0 0.0
    %1349 = vmatpush2.msra.mxu0 0.0
    %1350 = vmatprep.subr.mxu0 0.0
    %1351 = vmatpush2.msra.mxu0 0.0
    %1352 = vmatprep.subr.mxu0 0.0
    %1353 = vmatpush2.msra.mxu0 0.0
    %1354 = vmatprep.subr.mxu0 0.0
    %1355 = vmatpush2.msra.mxu0 0.0
    %1356 = vmatprep.subr.mxu0 0.0
    %1357 = vmatpush2.msra.mxu0 0.0
    %1358 = vmatprep.subr.mxu0 0.0
    %1359 = vmatpush2.msra.mxu0 0.0
    %1360 = vmatprep.subr.mxu0 0.0
    %1361 = vmatpush2.msra.mxu0 0.0
    %1362 = vmatprep.subr.mxu0 0.0
    %1363 = vmatpush2.msra.mxu0 0.0
    %1364 = vmatprep.subr.mxu0 0.0
    %1365 = vmatpush2.msra.mxu0 0.0
    %1366 = vmatprep.subr.mxu0 0.0
    %1367 = vmatpush2.msra.mxu0 0.0
    %1368 = vmatprep.subr.mxu0 0.0
    %1369 = vmatpush2.msra.mxu0 0.0
    %1370 = vmatprep.subr.mxu0 0.0
    %1371 = vmatpush2.msra.mxu0 0.0
    %1372 = vmatprep.subr.mxu0 0.0
    %1373 = vmatpush2.msra.mxu0 0.0
    %1374 = vmatprep.mubr.f32.mxu0 0.0
    %1375 = vmatmul.mubr.f32.gmra.mxu0 %v1309
    %v1376 = vpop.f32.mrf.mxu0
    %v1377 = vadd.f32 0.0, %v1376
    %v1378 = vpop.f32.mrf.mxu0
    %1379 = vdwg.mxu0
    %v1380 = vmul.f32 %v1377, 0.0625
    %v1381 = vpack.c.bf16 %v1380, %v1380
    %v1398 = vunpack.c.l.b16 %v1287
    %v1399 = vunpack.c.l.b16 %v1288
    %v1400 = vunpack.c.l.b16 %v1289
    %v1401 = vunpack.c.l.b16 %v1290
    %v1402 = vunpack.c.l.b16 %v1291
    %v1403 = vunpack.c.l.b16 %v1292
    %v1404 = vunpack.c.l.b16 %v1293
    %v1405 = vunpack.c.l.b16 %v1294
    %v1406 = vunpack.c.l.b16 %v1295
    %v1407 = vunpack.c.l.b16 %v1296
    %v1408 = vunpack.c.l.b16 %v1297
    %v1409 = vunpack.c.l.b16 %v1298
    %v1410 = vunpack.c.l.b16 %v1299
    %v1411 = vunpack.c.l.b16 %v1300
    %v1412 = vunpack.c.l.b16 %v1301
    %v1413 = vunpack.c.l.b16 %v1302
    %v1414 = vpack.c.b16 %v1399, %v1398
    %v1415 = vpack.c.b16 %v1401, %v1400
    %v1416 = vpack.c.b16 %v1403, %v1402
    %v1417 = vpack.c.b16 %v1405, %v1404
    %v1418 = vpack.c.b16 %v1407, %v1406
    %v1419 = vpack.c.b16 %v1409, %v1408
    %v1420 = vpack.c.b16 %v1411, %v1410
    %v1421 = vpack.c.b16 %v1413, %v1412
    %1430 = vmatprep.subr.bf16.mxu0 0
    %1431 = vmatpush1.bf16.msra.mxu0 %v1421
    %1432 = vmatprep.subr.bf16.mxu0 0
    %1433 = vmatpush1.bf16.msra.mxu0 %v1420
    %1434 = vmatprep.subr.bf16.mxu0 0
    %1435 = vmatpush1.bf16.msra.mxu0 %v1419
    %1436 = vmatprep.subr.bf16.mxu0 0
    %1437 = vmatpush1.bf16.msra.mxu0 %v1418
    %1438 = vmatprep.subr.bf16.mxu0 0
    %1439 = vmatpush1.bf16.msra.mxu0 %v1417
    %1440 = vmatprep.subr.bf16.mxu0 0
    %1441 = vmatpush1.bf16.msra.mxu0 %v1416
    %1442 = vmatprep.subr.bf16.mxu0 0
    %1443 = vmatpush1.bf16.msra.mxu0 %v1415
    %1444 = vmatprep.subr.bf16.mxu0 0
    %1445 = vmatpush1.bf16.msra.mxu0 %v1414
    %1446 = vmatprep.subr.bf16.mxu0 0
    %1447 = vmatpush2.bf16.msra.mxu0 0
    %1448 = vmatprep.subr.bf16.mxu0 0
    %1449 = vmatpush2.bf16.msra.mxu0 0
    %1450 = vmatprep.subr.bf16.mxu0 0
    %1451 = vmatpush2.bf16.msra.mxu0 0
    %1452 = vmatprep.subr.bf16.mxu0 0
    %1453 = vmatpush2.bf16.msra.mxu0 0
    %1454 = vmatprep.subr.bf16.mxu0 0
    %1455 = vmatpush2.bf16.msra.mxu0 0
    %1456 = vmatprep.subr.bf16.mxu0 0
    %1457 = vmatpush2.bf16.msra.mxu0 0
    %1458 = vmatprep.subr.bf16.mxu0 0
    %1459 = vmatpush2.bf16.msra.mxu0 0
    %1460 = vmatprep.subr.bf16.mxu0 0
    %1461 = vmatpush2.bf16.msra.mxu0 0
    %1462 = vmatprep.mubr.bf16.mxu0 0
    %1463 = vmatmul.mubr.bf16.gmra.mxu0 %v1381
    %v1464 = vpop.f32.mrf.mxu0
    %v1465 = vadd.f32 0.0, %v1464
    %v1466 = vpop.f32.mrf.mxu0
    %v1467 = vpop.f32.mrf.mxu0
    %v1468 = vpop.f32.mrf.mxu0
    %1469 = vdwg.mxu0
    %v1470 = vlaneseq
    %v1471 = vshrl.u32 %v1470, 7
    %v1472 = vsub.s32 0, %v1471
    %v1473 = vrot.slane %v1465, %v1472
    %v1474 = vsub.f32 %v1270, %v1473
    %v1475 = vmul.f32 %v1474, %v1474
    %v1476 = vsel %vm204, %v1475, 0.0
    %v1477 = vrot.slane %v1476, 4
    %v1478 = vadd.f32 %v1476, %v1477
    %v1479 = vrot.slane %v1478, 2
    %v1480 = vadd.f32 %v1478, %v1479
    %v1481 = vrot.slane %v1480, 1
    %v1482 = vadd.f32 %v1480, %v1481
    %1483 = vmatprep.subr.mxu0 0.0
    %1484 = vmatpush1.msra.mxu0 %v1286
    %1485 = vmatprep.subr.mxu0 0.0
    %1486 = vmatpush1.msra.mxu0 %v1285
    %1487 = vmatprep.subr.mxu0 0.0
    %1488 = vmatpush1.msra.mxu0 %v1284
    %1489 = vmatprep.subr.mxu0 0.0
    %1490 = vmatpush1.msra.mxu0 %v1283
    %1491 = vmatprep.subr.mxu0 0.0
    %1492 = vmatpush1.msra.mxu0 %v1282
    %1493 = vmatprep.subr.mxu0 0.0
    %1494 = vmatpush1.msra.mxu0 %v1281
    %1495 = vmatprep.subr.mxu0 0.0
    %1496 = vmatpush1.msra.mxu0 %v1280
    %1497 = vmatprep.subr.mxu0 0.0
    %1498 = vmatpush1.msra.mxu0 %v1279
    %1499 = vmatprep.subr.mxu0 0.0
    %1500 = vmatpush1.msra.mxu0 %v1278
    %1501 = vmatprep.subr.mxu0 0.0
    %1502 = vmatpush1.msra.mxu0 %v1277
    %1503 = vmatprep.subr.mxu0 0.0
    %1504 = vmatpush1.msra.mxu0 %v1276
    %1505 = vmatprep.subr.mxu0 0.0
    %1506 = vmatpush1.msra.mxu0 %v1275
    %1507 = vmatprep.subr.mxu0 0.0
    %1508 = vmatpush1.msra.mxu0 %v1274
    %1509 = vmatprep.subr.mxu0 0.0
    %1510 = vmatpush1.msra.mxu0 %v1273
    %1511 = vmatprep.subr.mxu0 0.0
    %1512 = vmatpush1.msra.mxu0 %v1272
    %1513 = vmatprep.subr.mxu0 0.0
    %1514 = vmatpush1.msra.mxu0 %v1271
    %1515 = vmatprep.subr.mxu0 0.0
    %1516 = vmatpush2.msra.mxu0 0.0
    %1517 = vmatprep.subr.mxu0 0.0
    %1518 = vmatpush2.msra.mxu0 0.0
    %1519 = vmatprep.subr.mxu0 0.0
    %1520 = vmatpush2.msra.mxu0 0.0
    %1521 = vmatprep.subr.mxu0 0.0
    %1522 = vmatpush2.msra.mxu0 0.0
    %1523 = vmatprep.subr.mxu0 0.0
    %1524 = vmatpush2.msra.mxu0 0.0
    %1525 = vmatprep.subr.mxu0 0.0
    %1526 = vmatpush2.msra.mxu0 0.0
    %1527 = vmatprep.subr.mxu0 0.0
    %1528 = vmatpush2.msra.mxu0 0.0
    %1529 = vmatprep.subr.mxu0 0.0
    %1530 = vmatpush2.msra.mxu0 0.0
    %1531 = vmatprep.subr.mxu0 0.0
    %1532 = vmatpush2.msra.mxu0 0.0
    %1533 = vmatprep.subr.mxu0 0.0
    %1534 = vmatpush2.msra.mxu0 0.0
    %1535 = vmatprep.subr.mxu0 0.0
    %1536 = vmatpush2.msra.mxu0 0.0
    %1537 = vmatprep.subr.mxu0 0.0
    %1538 = vmatpush2.msra.mxu0 0.0
    %1539 = vmatprep.subr.mxu0 0.0
    %1540 = vmatpush2.msra.mxu0 0.0
    %1541 = vmatprep.subr.mxu0 0.0
    %1542 = vmatpush2.msra.mxu0 0.0
    %1543 = vmatprep.subr.mxu0 0.0
    %1544 = vmatpush2.msra.mxu0 0.0
    %1545 = vmatprep.subr.mxu0 0.0
    %1546 = vmatpush2.msra.mxu0 0.0
    %1547 = vmatprep.mubr.f32.mxu0 0.0
    %1548 = vmatmul.mubr.f32.gmra.mxu0 %v1482
    %v1549 = vpop.f32.mrf.mxu0
    %v1550 = vadd.f32 0.0, %v1549
    %v1551 = vpop.f32.mrf.mxu0
    %1552 = vdwg.mxu0
    %v1553 = vmul.f32 %v1550, 0.0625
    %v1554 = vadd.f32 %v1553, 1e-05
    %v1555 = vrsqrt.pop %v1554
    %v1556 = vld [vmem:[#allocation7 + $0x191] sm:$0x1]
    %v1557 = vmul.f32 %v1555, %v1556
    %v1558 = vpack.c.bf16 %v1557, %v1557
    %1559 = vmatprep.subr.bf16.mxu0 0
    %1560 = vmatpush1.bf16.msra.mxu0 %v1421
    %1561 = vmatprep.subr.bf16.mxu0 0
    %1562 = vmatpush1.bf16.msra.mxu0 %v1420
    %1563 = vmatprep.subr.bf16.mxu0 0
    %1564 = vmatpush1.bf16.msra.mxu0 %v1419
    %1565 = vmatprep.subr.bf16.mxu0 0
    %1566 = vmatpush1.bf16.msra.mxu0 %v1418
    %1567 = vmatprep.subr.bf16.mxu0 0
    %1568 = vmatpush1.bf16.msra.mxu0 %v1417
    %1569 = vmatprep.subr.bf16.mxu0 0
    %1570 = vmatpush1.bf16.msra.mxu0 %v1416
    %1571 = vmatprep.subr.bf16.mxu0 0
    %1572 = vmatpush1.bf16.msra.mxu0 %v1415
    %1573 = vmatprep.subr.bf16.mxu0 0
    %1574 = vmatpush1.bf16.msra.mxu0 %v1414
    %1575 = vmatprep.subr.bf16.mxu0 0
    %1576 = vmatpush2.bf16.msra.mxu0 0
    %1577 = vmatprep.subr.bf16.mxu0 0
    %1578 = vmatpush2.bf16.msra.mxu0 0
    %1579 = vmatprep.subr.bf16.mxu0 0
    %1580 = vmatpush2.bf16.msra.mxu0 0
    %1581 = vmatprep.subr.bf16.mxu0 0
    %1582 = vmatpush2.bf16.msra.mxu0 0
    %1583 = vmatprep.subr.bf16.mxu0 0
    %1584 = vmatpush2.bf16.msra.mxu0 0
    %1585 = vmatprep.subr.bf16.mxu0 0
    %1586 = vmatpush2.bf16.msra.mxu0 0
    %1587 = vmatprep.subr.bf16.mxu0 0
    %1588 = vmatpush2.bf16.msra.mxu0 0
    %1589 = vmatprep.subr.bf16.mxu0 0
    %1590 = vmatpush2.bf16.msra.mxu0 0
    %1591 = vmatprep.mubr.bf16.mxu0 0
    %1592 = vmatmul.mubr.bf16.gmra.mxu0 %v1558
    %v1593 = vpop.f32.mrf.mxu0
    %v1594 = vadd.f32 0.0, %v1593
    %v1595 = vpop.f32.mrf.mxu0
    %v1596 = vpop.f32.mrf.mxu0
    %v1597 = vpop.f32.mrf.mxu0
    %1598 = vdwg.mxu0
    %v1599 = vlaneseq
    %v1600 = vshrl.u32 %v1599, 7
    %v1601 = vsub.s32 0, %v1600
    %v1602 = vrot.slane %v1594, %v1601
    %v1603 = vmul.f32 %v1474, %v1602
    %v1604 = vld [vmem:[#allocation7 + $0x192] sm:$0x1]
    %v1605 = vlaneseq
    %v1606 = vshrl.u32 %v1605, 7
    %v1607 = vsub.s32 0, %v1606
    %v1608 = vrot.slane %v1604, %v1607
    %v1609 = vadd.f32 %v1603, %v1608
    %v1610 = vpack.c.bf16 %v1609, %v1609
    %v1611 = vld [vmem:[#allocation5 + $0x1c8] sm:$0xf]
    %v1612 = vld [vmem:[#allocation5 + $0x1cc] sm:$0xf]
    %v1613 = vld [vmem:[#allocation5 + $0x1d0] sm:$0xf]
    %v1614 = vld [vmem:[#allocation5 + $0x1d4] sm:$0xf]
    %v1615 = vld [vmem:[#allocation5 + $0x1d8] sm:$0xf]
    %v1616 = vld [vmem:[#allocation5 + $0x1dc] sm:$0xf]
    %v1617 = vld [vmem:[#allocation5 + $0x1e0] sm:$0xf]
    %v1618 = vld [vmem:[#allocation5 + $0x1e4] sm:$0xf]
    %v1619 = vld [vmem:[#allocation5 + $0x1e8] sm:$0xf]
    %v1620 = vld [vmem:[#allocation5 + $0x1ec] sm:$0xf]
    %v1621 = vld [vmem:[#allocation5 + $0x1f0] sm:$0xf]
    %v1622 = vld [vmem:[#allocation5 + $0x1f4] sm:$0xf]
    %v1623 = vld [vmem:[#allocation5 + $0x1f8] sm:$0xf]
    %v1624 = vld [vmem:[#allocation5 + $0x1fc] sm:$0xf]
    %v1625 = vld [vmem:[#allocation5 + $0x200] sm:$0xf]
    %v1626 = vld [vmem:[#allocation5 + $0x204] sm:$0xf]
    %v1627 = vld [vmem:[#allocation7 + $0x19a] sm:$0x1]
    %v1628 = vlaneseq
    %v1629 = vshrl.u32 %v1628, 7
    %v1630 = vsub.s32 0, %v1629
    %v1631 = vrot.slane %v1627, %v1630
    %v1648 = vunpack.c.l.b16 %v1611
    %v1649 = vunpack.c.l.b16 %v1612
    %v1650 = vunpack.c.l.b16 %v1613
    %v1651 = vunpack.c.l.b16 %v1614
    %v1652 = vunpack.c.l.b16 %v1615
    %v1653 = vunpack.c.l.b16 %v1616
    %v1654 = vunpack.c.l.b16 %v1617
    %v1655 = vunpack.c.l.b16 %v1618
    %v1656 = vunpack.c.l.b16 %v1619
    %v1657 = vunpack.c.l.b16 %v1620
    %v1658 = vunpack.c.l.b16 %v1621
    %v1659 = vunpack.c.l.b16 %v1622
    %v1660 = vunpack.c.l.b16 %v1623
    %v1661 = vunpack.c.l.b16 %v1624
    %v1662 = vunpack.c.l.b16 %v1625
    %v1663 = vunpack.c.l.b16 %v1626
    %v1664 = vpack.c.b16 %v1649, %v1648
    %v1665 = vpack.c.b16 %v1651, %v1650
    %v1666 = vpack.c.b16 %v1653, %v1652
    %v1667 = vpack.c.b16 %v1655, %v1654
    %v1668 = vpack.c.b16 %v1657, %v1656
    %v1669 = vpack.c.b16 %v1659, %v1658
    %v1670 = vpack.c.b16 %v1661, %v1660
    %v1671 = vpack.c.b16 %v1663, %v1662
    %1680 = vmatprep.subr.bf16.mxu0 0
    %1681 = vmatpush1.bf16.msra.mxu0 %v1671
    %1682 = vmatprep.subr.bf16.mxu0 0
    %1683 = vmatpush1.bf16.msra.mxu0 %v1670
    %1684 = vmatprep.subr.bf16.mxu0 0
    %1685 = vmatpush1.bf16.msra.mxu0 %v1669
    %1686 = vmatprep.subr.bf16.mxu0 0
    %1687 = vmatpush1.bf16.msra.mxu0 %v1668
    %1688 = vmatprep.subr.bf16.mxu0 0
    %1689 = vmatpush1.bf16.msra.mxu0 %v1667
    %1690 = vmatprep.subr.bf16.mxu0 0
    %1691 = vmatpush1.bf16.msra.mxu0 %v1666
    %1692 = vmatprep.subr.bf16.mxu0 0
    %1693 = vmatpush1.bf16.msra.mxu0 %v1665
    %1694 = vmatprep.subr.bf16.mxu0 0
    %1695 = vmatpush1.bf16.msra.mxu0 %v1664
    %1696 = vmatprep.subr.bf16.mxu0 0
    %1697 = vmatpush2.bf16.msra.mxu0 0
    %1698 = vmatprep.subr.bf16.mxu0 0
    %1699 = vmatpush2.bf16.msra.mxu0 0
    %1700 = vmatprep.subr.bf16.mxu0 0
    %1701 = vmatpush2.bf16.msra.mxu0 0
    %1702 = vmatprep.subr.bf16.mxu0 0
    %1703 = vmatpush2.bf16.msra.mxu0 0
    %1704 = vmatprep.subr.bf16.mxu0 0
    %1705 = vmatpush2.bf16.msra.mxu0 0
    %1706 = vmatprep.subr.bf16.mxu0 0
    %1707 = vmatpush2.bf16.msra.mxu0 0
    %1708 = vmatprep.subr.bf16.mxu0 0
    %1709 = vmatpush2.bf16.msra.mxu0 0
    %1710 = vmatprep.subr.bf16.mxu0 0
    %1711 = vmatpush2.bf16.msra.mxu0 0
    %1712 = vmatprep.mubr.bf16.mxu0 0
    %1713 = vmatmul.mubr.bf16.gmra.mxu0 %v1610
    %v1714 = vpop.f32.mrf.mxu0
    %v1715 = vadd.f32 %v1631, %v1714
    %v1716 = vpop.f32.mrf.mxu0
    %v1717 = vpop.f32.mrf.mxu0
    %v1718 = vpop.f32.mrf.mxu0
    %1719 = vdwg.mxu0
    %1721 = vrot.lane.b32.xlu0 %v1087, 64
    %v1722 = vpop.permute.xlu0 %1721
    %vm1724 = vcmask 523264
    %v1725 = vsel %vm1724, %v1715, %v1098
    %vm1726 = vcmask 588800
    %v1727 = vsel %vm1726, %v1725, %v1722
    %vm1728 = vcmask 654336
    %v1729 = vsel %vm1728, %v1727, 0.0
    %1730 = vst [vmem:[#allocation8] sm:$0xff] %v1729
    // Predicated region
    $region26: #{tpu_custom_call.1} parent=1 // pred_check
      _
    $region27: #{tpu_custom_call.1} parent=1 // pred_check_branch
      %1732 = sbr.rel (0) target = $region29
    $region28: #{tpu_custom_call.1} parent=1 // pred_region
      %s1734 = ssub.s32 128, 128
      %1735 = vsyncadd [#allocation4], %s1734
      %s1737 = sshll.u32 [#allocation8], 4
      %s1738 = int_to_ptr.vmem [resolvable:$true] %s1737
      %1740 = dma.vmem_to_hbm [thread:$0]  %s1738, 128, %s3, [#allocation4]
    $region29: #{tpu_custom_call.1} parent=1 // pred_fallthru
      _
    // Predicated region
    $region30: #{tpu_custom_call.1} parent=1 // pred_check
      _
    $region31: #{tpu_custom_call.1} parent=1 // pred_check_branch
      %1742 = sbr.rel (0) target = $region33
    $region32: #{tpu_custom_call.1} parent=1 // pred_region
      %1743 = dma.done [#allocation4], 128
    $region33: #{tpu_custom_call.1} parent=1 // pred_fallthru
      _
    %1744 = vsyncpa [#allocation3], 1
    %1745 = vsyncpa [#allocation6], 1
    %1746 = vsyncpa [#allocation4], 1

</llo_original>
